<compile_context>
chip_gen: v7x
topology: tpu7x:2x2x1
jax: 0.10.0
libtpu: 0.0.40
codegen_flags: <defaults>
</compile_context>

<pallas_src>
import functools

import jax
import jax.numpy as jnp
from jax.experimental import pallas as pl
from jax.experimental.pallas import tpu as pltpu

NUM_HIGHWAY_LAYERS = 3


def highway_qa_kernel(x_ref, wgt_ref, bgt_ref, wqa_ref, bqa_ref, out_ref):
    """One row-tile of the highway encoder + qa_outputs head.

    x_ref  : (tm, H)     f32 activations tile
    wgt_ref: (3, H, 2H)  bf16 fused [gate | transform] weights, (in, out)
    bgt_ref: (3, 1, 2H)  f32 fused [gate | transform] biases
    wqa_ref: (2, H)      bf16 qa_outputs weight (PyTorch (out, in) layout)
    bqa_ref: (2, 1)      f32 qa_outputs bias
    out_ref: (2, tm)     f32 [start; end] logits, lane-dense (transposed)
    """
    h = x_ref.shape[1]
    x = x_ref[...].astype(jnp.float32)
    for l in range(NUM_HIGHWAY_LAYERS):
        # Single fused MXU pass per layer: (tm, H) @ (H, 2H), f32 accumulation.
        gt = jnp.dot(x.astype(jnp.bfloat16), wgt_ref[l],
                     preferred_element_type=jnp.float32) + bgt_ref[l]
        g = jax.nn.sigmoid(gt[:, :h])        # gate      (f32 VPU/EUP)
        t = jnp.maximum(gt[:, h:], 0.0)      # relu transform
        x = x + g * (t - x)                  # highway combine (saves one mul)
    # qa head emitted transposed so the large (tm) axis lands on the lane axis:
    #   (2, H) contracted with (tm, H) on H  ->  (2, tm)
    logits_t = jax.lax.dot_general(
        wqa_ref[...], x.astype(jnp.bfloat16),
        dimension_numbers=(((1,), (1,)), ((), ())),
        preferred_element_type=jnp.float32) + bqa_ref[...]
    out_ref[...] = logits_t.astype(out_ref.dtype)


@functools.partial(jax.jit, static_argnames=("tm",))
def albert_linear_highway_forward(sequence_output, params, *, tm=256):
    """sequence_output: [B, S, H] f32 (ALBERT last_hidden_state).

    Returns (start_logits, end_logits), each [B, S].
    """
    B, S, H = sequence_output.shape
    M = B * S
    tm = min(tm, M)
    assert M % tm == 0 and tm % 8 == 0, "row count must tile evenly"
    assert H % 128 == 0, "hidden size must be lane-aligned"

    x2d = sequence_output.reshape(M, H)

    # Fuse per-layer [gate | transform] weights into one (H, 2H) matrix.
    # PyTorch Linear stores (out, in); transpose to (in, out) for x @ W.
    wgt = jnp.concatenate(
        [jnp.swapaxes(params["wg"], 1, 2),
         jnp.swapaxes(params["wt"], 1, 2)], axis=-1).astype(jnp.bfloat16)   # (3,H,2H)
    bgt = jnp.concatenate([params["bg"], params["bt"]],
                          axis=-1)[:, None, :].astype(jnp.float32)          # (3,1,2H)
    wqa = params["wqa"].astype(jnp.bfloat16)                                # (2,H)
    bqa = params["bqa"].reshape(2, 1).astype(jnp.float32)                   # (2,1)

    flops = 2 * M * H * (2 * H) * NUM_HIGHWAY_LAYERS + 2 * M * H * 2
    transcendentals = NUM_HIGHWAY_LAYERS * M * H                            # sigmoid
    bytes_accessed = (x2d.size * 4 + wgt.size * 2 + bgt.size * 4
                      + wqa.size * 2 + bqa.size * 4 + 2 * M * 4)

    logits_t = pl.pallas_call(
        highway_qa_kernel,
        out_shape=jax.ShapeDtypeStruct((2, M), jnp.float32),
        grid_spec=pltpu.PrefetchScalarGridSpec(
            num_scalar_prefetch=0,
            grid=(M // tm,),
            in_specs=[
                # activation rows stream through the pipeline
                pl.BlockSpec((tm, H), lambda i: (i, 0)),
                # grid-invariant weights/biases: single-buffered (one VMEM copy)
                pl.BlockSpec((NUM_HIGHWAY_LAYERS, H, 2 * H),
                             lambda i: (0, 0, 0),
                             pipeline_mode=pl.Buffered(1)),
                pl.BlockSpec((NUM_HIGHWAY_LAYERS, 1, 2 * H),
                             lambda i: (0, 0, 0),
                             pipeline_mode=pl.Buffered(1)),
                pl.BlockSpec((2, H), lambda i: (0, 0),
                             pipeline_mode=pl.Buffered(1)),
                pl.BlockSpec((2, 1), lambda i: (0, 0),
                             pipeline_mode=pl.Buffered(1)),
            ],
            out_specs=pl.BlockSpec((2, tm), lambda i: (0, i)),
        ),
        compiler_params=pltpu.CompilerParams(
            dimension_semantics=("parallel",)),
        cost_estimate=pl.CostEstimate(
            flops=flops,
            transcendentals=transcendentals,
            bytes_accessed=bytes_accessed),
    )(x2d, wgt, bgt, wqa, bqa)

    logits = logits_t.reshape(2, B, S)
    return logits[0], logits[1]


def init_params(key, hidden):
    """Deterministic synthetic parameters in PyTorch layout:
    Linear weights (out, in), biases (out,)."""
    ks = jax.random.split(key, 6)
    scale = 1.0 / jnp.sqrt(hidden)
    u = lambda k, shape: jax.random.uniform(k, shape, jnp.float32, -scale, scale)
    return {
        "wt": u(ks[0], (NUM_HIGHWAY_LAYERS, hidden, hidden)),
        "bt": u(ks[1], (NUM_HIGHWAY_LAYERS, hidden)),
        "wg": u(ks[2], (NUM_HIGHWAY_LAYERS, hidden, hidden)),
        "bg": u(ks[3], (NUM_HIGHWAY_LAYERS, hidden)),
        "wqa": u(ks[4], (2, hidden)),
        "bqa": u(ks[5], (2,)),
    }


def reference_forward(sequence_output, params):
    """Pure-JAX f32 reference of HighwayEncoder(3) + qa_outputs + split."""
    x = sequence_output
    for l in range(NUM_HIGHWAY_LAYERS):
        g = jax.nn.sigmoid(x @ params["wg"][l].T + params["bg"][l])
        t = jax.nn.relu(x @ params["wt"][l].T + params["bt"][l])
        x = g * t + (1.0 - g) * x
    logits = x @ params["wqa"].T + params["bqa"]
    return logits[..., 0], logits[..., 1]


if __name__ == "__main__":
    # Small but MXU-shaped demo: B*S = 512 rows -> 2 grid steps at tm=256,
    # hidden = 128 (lane-aligned stand-in for the ALBERT hidden size).
    B, S, H = 2, 256, 128
    key = jax.random.PRNGKey(0)
    k_x, k_p = jax.random.split(key)

    sequence_output = jax.random.normal(k_x, (B, S, H), jnp.float32)
    params = init_params(k_p, H)

    start_logits, end_logits = albert_linear_highway_forward(
        sequence_output, params, tm=256)
    jax.block_until_ready((start_logits, end_logits))

    ref_start, ref_end = reference_forward(sequence_output, params)
    assert start_logits.shape == (B, S) and end_logits.shape == (B, S)
    # bf16 weights on the MXU path -> looser tolerance than pure f32.
    assert jnp.allclose(start_logits, ref_start, atol=5e-2, rtol=5e-2)
    assert jnp.allclose(end_logits, ref_end, atol=5e-2, rtol=5e-2)

    print("KERNEL_OK")
</pallas_src>

<mosaic_0001>
module attributes {stable_mosaic.version = 11 : i64} {
  func.func @highway_qa_kernel(%arg0: i32, %arg1: memref<256x128xf32, #tpu.memory_space<vmem>>, %arg2: memref<3x128x256xbf16, #tpu.memory_space<vmem>>, %arg3: memref<3x1x256xf32, #tpu.memory_space<vmem>>, %arg4: memref<2x128xbf16, #tpu.memory_space<vmem>>, %arg5: memref<2x1xf32, #tpu.memory_space<vmem>>, %arg6: memref<2x256xf32, #tpu.memory_space<vmem>>) attributes {dimension_semantics = [#tpu.dimension_semantics<parallel>], iteration_bounds = array<i64: 2>, scalar_prefetch = 0 : i64, scratch_operands = 0 : i64, tpu.core_type = #tpu.core_type<tc>, window_params = [{transform_indices = @transform_0, window_bounds = array<i64: 256, 128>}, {pipeline_mode = #tpu.pipeline_mode<synchronous>, transform_indices = @transform_1, window_bounds = array<i64: 3, 128, 256>}, {pipeline_mode = #tpu.pipeline_mode<synchronous>, transform_indices = @transform_2, window_bounds = array<i64: 3, 1, 256>}, {pipeline_mode = #tpu.pipeline_mode<synchronous>, transform_indices = @transform_3, window_bounds = array<i64: 2, 128>}, {pipeline_mode = #tpu.pipeline_mode<synchronous>, transform_indices = @transform_4, window_bounds = array<i64: 2, 1>}, {transform_indices = @transform_5, window_bounds = array<i64: 2, 256>}]} {
    %c0 = arith.constant 0 : index
    %c0_0 = arith.constant 0 : index
    %0 = vector.load %arg1[%c0, %c0_0] : memref<256x128xf32, #tpu.memory_space<vmem>>, vector<256x128xf32>
    %1 = arith.truncf %0 : vector<256x128xf32> to vector<256x128xbf16>
    %c0_1 = arith.constant 0 : index
    %c0_2 = arith.constant 0 : index
    %c0_3 = arith.constant 0 : index
    %2 = vector.load %arg2[%c0_1, %c0_2, %c0_3] : memref<3x128x256xbf16, #tpu.memory_space<vmem>>, vector<1x128x256xbf16>
    %3 = vector.shape_cast %2 : vector<1x128x256xbf16> to vector<128x256xbf16>
    %cst = arith.constant dense<0.000000e+00> : vector<256x256xf32>
    %4 = tpu.matmul %1, %3, %cst {dimension_numbers = #tpu.dot_dimension_numbers<[1], [0], [0], [1], [0, 0, 1, 1], [], []>} : vector<256x128xbf16>, vector<128x256xbf16>, vector<256x256xf32> -> vector<256x256xf32>
    %c0_4 = arith.constant 0 : index
    %c0_5 = arith.constant 0 : index
    %c0_6 = arith.constant 0 : index
    %5 = vector.load %arg3[%c0_4, %c0_5, %c0_6] : memref<3x1x256xf32, #tpu.memory_space<vmem>>, vector<1x1x256xf32>
    %6 = vector.shape_cast %5 : vector<1x1x256xf32> to vector<1x256xf32>
    %7 = vector.broadcast %6 : vector<1x256xf32> to vector<256x256xf32>
    %8 = arith.addf %4, %7 : vector<256x256xf32>
    %9 = vector.extract_strided_slice %8 {offsets = [0, 0], sizes = [256, 128], strides = [1, 1]} : vector<256x256xf32> to vector<256x128xf32>
    %10 = arith.negf %9 : vector<256x128xf32>
    %11 = math.exp %10 : vector<256x128xf32>
    %cst_7 = arith.constant 1.000000e+00 : f32
    %12 = vector.broadcast %cst_7 : f32 to vector<256x128xf32>
    %13 = arith.addf %12, %11 : vector<256x128xf32>
    %14 = arith.divf %12, %13 : vector<256x128xf32>
    %15 = vector.extract_strided_slice %8 {offsets = [0, 128], sizes = [256, 128], strides = [1, 1]} : vector<256x256xf32> to vector<256x128xf32>
    %cst_8 = arith.constant 0.000000e+00 : f32
    %16 = vector.broadcast %cst_8 : f32 to vector<256x128xf32>
    %17 = arith.maximumf %15, %16 : vector<256x128xf32>
    %18 = arith.subf %17, %0 : vector<256x128xf32>
    %19 = arith.mulf %14, %18 : vector<256x128xf32>
    %20 = arith.addf %0, %19 : vector<256x128xf32>
    %21 = arith.truncf %20 : vector<256x128xf32> to vector<256x128xbf16>
    %c1 = arith.constant 1 : index
    %c0_9 = arith.constant 0 : index
    %c0_10 = arith.constant 0 : index
    %22 = vector.load %arg2[%c1, %c0_9, %c0_10] : memref<3x128x256xbf16, #tpu.memory_space<vmem>>, vector<1x128x256xbf16>
    %23 = vector.shape_cast %22 : vector<1x128x256xbf16> to vector<128x256xbf16>
    %cst_11 = arith.constant dense<0.000000e+00> : vector<256x256xf32>
    %24 = tpu.matmul %21, %23, %cst_11 {dimension_numbers = #tpu.dot_dimension_numbers<[1], [0], [0], [1], [0, 0, 1, 1], [], []>} : vector<256x128xbf16>, vector<128x256xbf16>, vector<256x256xf32> -> vector<256x256xf32>
    %c1_12 = arith.constant 1 : index
    %c0_13 = arith.constant 0 : index
    %c0_14 = arith.constant 0 : index
    %25 = vector.load %arg3[%c1_12, %c0_13, %c0_14] : memref<3x1x256xf32, #tpu.memory_space<vmem>>, vector<1x1x256xf32>
    %26 = vector.shape_cast %25 : vector<1x1x256xf32> to vector<1x256xf32>
    %27 = vector.broadcast %26 : vector<1x256xf32> to vector<256x256xf32>
    %28 = arith.addf %24, %27 : vector<256x256xf32>
    %29 = vector.extract_strided_slice %28 {offsets = [0, 0], sizes = [256, 128], strides = [1, 1]} : vector<256x256xf32> to vector<256x128xf32>
    %30 = arith.negf %29 : vector<256x128xf32>
    %31 = math.exp %30 : vector<256x128xf32>
    %cst_15 = arith.constant 1.000000e+00 : f32
    %32 = vector.broadcast %cst_15 : f32 to vector<256x128xf32>
    %33 = arith.addf %32, %31 : vector<256x128xf32>
    %34 = arith.divf %32, %33 : vector<256x128xf32>
    %35 = vector.extract_strided_slice %28 {offsets = [0, 128], sizes = [256, 128], strides = [1, 1]} : vector<256x256xf32> to vector<256x128xf32>
    %cst_16 = arith.constant 0.000000e+00 : f32
    %36 = vector.broadcast %cst_16 : f32 to vector<256x128xf32>
    %37 = arith.maximumf %35, %36 : vector<256x128xf32>
    %38 = arith.subf %37, %20 : vector<256x128xf32>
    %39 = arith.mulf %34, %38 : vector<256x128xf32>
    %40 = arith.addf %20, %39 : vector<256x128xf32>
    %41 = arith.truncf %40 : vector<256x128xf32> to vector<256x128xbf16>
    %c2 = arith.constant 2 : index
    %c0_17 = arith.constant 0 : index
    %c0_18 = arith.constant 0 : index
    %42 = vector.load %arg2[%c2, %c0_17, %c0_18] : memref<3x128x256xbf16, #tpu.memory_space<vmem>>, vector<1x128x256xbf16>
    %43 = vector.shape_cast %42 : vector<1x128x256xbf16> to vector<128x256xbf16>
    %cst_19 = arith.constant dense<0.000000e+00> : vector<256x256xf32>
    %44 = tpu.matmul %41, %43, %cst_19 {dimension_numbers = #tpu.dot_dimension_numbers<[1], [0], [0], [1], [0, 0, 1, 1], [], []>} : vector<256x128xbf16>, vector<128x256xbf16>, vector<256x256xf32> -> vector<256x256xf32>
    %c2_20 = arith.constant 2 : index
    %c0_21 = arith.constant 0 : index
    %c0_22 = arith.constant 0 : index
    %45 = vector.load %arg3[%c2_20, %c0_21, %c0_22] : memref<3x1x256xf32, #tpu.memory_space<vmem>>, vector<1x1x256xf32>
    %46 = vector.shape_cast %45 : vector<1x1x256xf32> to vector<1x256xf32>
    %47 = vector.broadcast %46 : vector<1x256xf32> to vector<256x256xf32>
    %48 = arith.addf %44, %47 : vector<256x256xf32>
    %49 = vector.extract_strided_slice %48 {offsets = [0, 0], sizes = [256, 128], strides = [1, 1]} : vector<256x256xf32> to vector<256x128xf32>
    %50 = arith.negf %49 : vector<256x128xf32>
    %51 = math.exp %50 : vector<256x128xf32>
    %cst_23 = arith.constant 1.000000e+00 : f32
    %52 = vector.broadcast %cst_23 : f32 to vector<256x128xf32>
    %53 = arith.addf %52, %51 : vector<256x128xf32>
    %54 = arith.divf %52, %53 : vector<256x128xf32>
    %55 = vector.extract_strided_slice %48 {offsets = [0, 128], sizes = [256, 128], strides = [1, 1]} : vector<256x256xf32> to vector<256x128xf32>
    %cst_24 = arith.constant 0.000000e+00 : f32
    %56 = vector.broadcast %cst_24 : f32 to vector<256x128xf32>
    %57 = arith.maximumf %55, %56 : vector<256x128xf32>
    %58 = arith.subf %57, %40 : vector<256x128xf32>
    %59 = arith.mulf %54, %58 : vector<256x128xf32>
    %60 = arith.addf %40, %59 : vector<256x128xf32>
    %c0_25 = arith.constant 0 : index
    %c0_26 = arith.constant 0 : index
    %61 = vector.load %arg4[%c0_25, %c0_26] : memref<2x128xbf16, #tpu.memory_space<vmem>>, vector<2x128xbf16>
    %62 = arith.truncf %60 : vector<256x128xf32> to vector<256x128xbf16>
    %cst_27 = arith.constant dense<0.000000e+00> : vector<2x256xf32>
    %63 = tpu.matmul %61, %62, %cst_27 {dimension_numbers = #tpu.dot_dimension_numbers<[1], [1], [0], [0], [0, 0, 1, 0], [], []>} : vector<2x128xbf16>, vector<256x128xbf16>, vector<2x256xf32> -> vector<2x256xf32>
    %c0_28 = arith.constant 0 : index
    %c0_29 = arith.constant 0 : index
    %64 = vector.load %arg5[%c0_28, %c0_29] : memref<2x1xf32, #tpu.memory_space<vmem>>, vector<2x1xf32>
    %65 = vector.broadcast %64 : vector<2x1xf32> to vector<2x256xf32>
    %66 = arith.addf %63, %65 : vector<2x256xf32>
    %c0_30 = arith.constant 0 : index
    %c0_31 = arith.constant 0 : index
    %67 = vector.load %arg6[%c0_30, %c0_31] : memref<2x256xf32, #tpu.memory_space<vmem>>, vector<2x256xf32>
    tpu.vector_store %arg6[%c0_30, %c0_31], %66 {strides = array<i32>} : memref<2x256xf32, #tpu.memory_space<vmem>>, vector<2x256xf32>,
    return
  }
  func.func @transform_0(%arg0: i32) -> (i32, i32) {
    %c0_i32 = arith.constant 0 : i32
    %c0_i32_0 = arith.constant 0 : i32
    return %arg0, %c0_i32 : i32, i32
  }
  func.func @transform_1(%arg0: i32) -> (i32, i32, i32) {
    %c0_i32 = arith.constant 0 : i32
    %c0_i32_0 = arith.constant 0 : i32
    %c0_i32_1 = arith.constant 0 : i32
    %c0_i32_2 = arith.constant 0 : i32
    return %c0_i32, %c0_i32_0, %c0_i32_1 : i32, i32, i32
  }
  func.func @transform_2(%arg0: i32) -> (i32, i32, i32) {
    %c0_i32 = arith.constant 0 : i32
    %c0_i32_0 = arith.constant 0 : i32
    %c0_i32_1 = arith.constant 0 : i32
    %c0_i32_2 = arith.constant 0 : i32
    return %c0_i32, %c0_i32_0, %c0_i32_1 : i32, i32, i32
  }
  func.func @transform_3(%arg0: i32) -> (i32, i32) {
    %c0_i32 = arith.constant 0 : i32
    %c0_i32_0 = arith.constant 0 : i32
    %c0_i32_1 = arith.constant 0 : i32
    return %c0_i32, %c0_i32_0 : i32, i32
  }
  func.func @transform_4(%arg0: i32) -> (i32, i32) {
    %c0_i32 = arith.constant 0 : i32
    %c0_i32_0 = arith.constant 0 : i32
    %c0_i32_1 = arith.constant 0 : i32
    return %c0_i32, %c0_i32_0 : i32, i32
  }
  func.func @transform_5(%arg0: i32) -> (i32, i32) {
    %c0_i32 = arith.constant 0 : i32
    %c0_i32_0 = arith.constant 0 : i32
    return %c0_i32, %arg0 : i32, i32
  }
}

</mosaic_0001>

<llo_original>
// kernel: squeeze.2
$region0: #{squeeze.2}
  %s0 = inlined_call_operand.vmem [shape: f32[512], index: 0, kind: input, shape index: {}]
  %s1 = inlined_call_operand.hbm [shape: f32[2,256], index: 1, kind: output, shape index: {}]
  $region1: #{squeeze.2} parent=0
    #allocation0 [shape = 'u8[2048]{0}', space=vmem, size = 0x800, scoped, tag = 'operand span for operand 1']
    #allocation1 [shape = 's32[1]{0}', space=sflag, size = 0x4, scoped, tag = 'scoped memory for squeeze.2']
    #allocation2 [shape = 'u8[8192]{0}', space=vmem, size = 0x2000, scoped, tag = 'scoped mem for output reshape']
    #allocation3 [shape = 'u8[4096]{0}', space=vmem, size = 0x1000, scoped, tag = 'scoped mem for input reshape']
    %2 = vsyncpa [#allocation1], 0
    %s4 = sshllo.u32 0, 4
    %v5 = vld [vmem:[%s0] sm:%s4]
    %6 = vst [vmem:[#allocation3] sm:%s4] %v5
    %v7 = vld [vmem:[#allocation3] sm:$0xf]
    %8 = vst [vmem:[#allocation2] ss:$8 sm:$0x3] %v7
    %s9 = scalar_lea.vmem [#allocation2], 4294967281
    %10 = vst [vmem:[%s9] ss:$8 sm:$0xc] %v7
    %s12 = sshllo.u32 0, 2
    %v14 = vld [vmem:[#allocation2] sm:%s12]
    %s15 = sshllo.u32 0, 2
    %16 = vst [vmem:[#allocation0] sm:%s15] %v14
    %s17 = scalar_lea.vmem [#allocation2], 8
    %v18 = vld [vmem:[%s17] sm:%s12]
    %s19 = sshllo.u32 0, 2
    %s20 = scalar_lea.vmem [#allocation0], 2
    %21 = vst [vmem:[%s20] sm:%s19] %v18
    %s23 = ssub.s32 64, 64
    %24 = vsyncadd [#allocation1], %s23
    %s26 = sshll.u32 [#allocation0], 4
    %s27 = int_to_ptr.vmem [resolvable:$true] %s26
    %29 = dma.vmem_to_hbm [thread:$0]  %s27, 64, %s1, [#allocation1]
    %30 = dma.done [#allocation1], 64
    %31 = vsyncpa [#allocation1], 1

// kernel: albert_linear_highway_forward.1
$region0: #{albert_linear_highway_forward.1}
  #allocation0 [shape = 'u32[]', space=smem, size = 0x4, offset = 0x4, fixed_abs, tag = 'smem constant byte address 0x4 - core index']
  #allocation1 [shape = 'u32[144,128]{1,0:T(1,128)}', space=vmem, size = 0x12000, scoped, tag = 'internal scratch']
  %s0 = inlined_call_operand.vmem [shape: f32[512,128], index: 0, kind: input, shape index: {}]
  %s1 = inlined_call_operand.vmem [shape: bf16[3,128,256], index: 1, kind: input, shape index: {}]
  %s2 = inlined_call_operand.vmem [shape: f32[3,1,256], index: 2, kind: input, shape index: {}]
  %s3 = inlined_call_operand.vmem [shape: bf16[2,128], index: 3, kind: input, shape index: {}]
  %s4 = inlined_call_operand.vmem [shape: f32[2,1], index: 4, kind: input, shape index: {}]
  %s5 = inlined_call_operand.vmem [shape: f32[2,512], index: 5, kind: output, shape index: {}]
  %s6 = sld [smem:[#allocation0]]
  $region53: #{albert_linear_highway_forward.1} parent=0
    _
  %s8 = ssub.s32 1, %s6
  %s9 = scalar_select 0, %s8, %s6
  loop: start=0, step=1, limit=4
  $region2: #{albert_linear_highway_forward.1} parent=0 // loop_pre_header
    _
  $region3: #{albert_linear_highway_forward.1} parent=0 // loop_header
    %s11 = sphi 0, %s15
    %p12 = scmp.ge.s32.totalorder %s11, 4
    %s21 = sphi 0, %s23
    %s24 = sphi 0, %s21
    %s25 = sphi 0, %s24
    %s41 = sphi 0, %s25
    %s45 = sphi 0, %s45
    %s47 = sphi 0, %s45
    %s48 = sphi 0, %s47
    %s62 = sphi 0, %s48
    %s66 = sphi 0, %s66
    %s68 = sphi 0, %s66
    %s69 = sphi 0, %s68
    %s83 = sphi 0, %s69
    %s87 = sphi 0, %s87
    %s89 = sphi 0, %s87
    %s90 = sphi 0, %s89
    %s104 = sphi 0, %s90
    %s108 = sphi 0, %s108
    %s110 = sphi 0, %s108
    %s111 = sphi 0, %s110
    %s125 = sphi 0, %s111
    %s131 = sphi 0, %s133
    %s134 = sphi 0, %s131
    %s135 = sphi 0, %s134
    %s151 = sphi 0, %s135
  $region4: #{albert_linear_highway_forward.1} parent=0 // loop_header_branch
    %14 = sbr.rel (%p12) target = $region8
  $region5: #{albert_linear_highway_forward.1} parent=0 // loop_body
    %s16 = ssub.s32 %s11, 1
    %s17 = ssub.s32 %s11, 2
    %s18 = sadd.s32 %s11, 1
    %s19 = ssub.s32 %s11, %s18
    %p20 = scmp.eq.s32.totalorder %s19, 0
    %s22 = sadd.s32 %s21, 1
    %s23 = scalar_select %p20, %s21, %s22
    %p26 = pneg %p20
    %p27 = scmp.eq.s32.totalorder %s11, 1
    %p28 = por %p26, %p27
    %p29 = scmp.ne.s32.totalorder %s21, %s24
    %p30 = scmp.eq.s32.totalorder %s11, 0
    %p31 = por %p29, %p30
    %p32 = scmp.ne.s32.totalorder %s21, %s24
    %p33 = scmp.eq.s32.totalorder %s16, 1
    %p34 = por %p32, %p33
    %p35 = scmp.ne.s32.totalorder %s24, %s25
    %p36 = scmp.eq.s32.totalorder %s16, 0
    %p37 = por %p35, %p36
    %p38 = scmp.ne.s32.totalorder %s24, %s25
    %p39 = scmp.eq.s32.totalorder %s17, 1
    %p40 = por %p38, %p39
    %p42 = scmp.ne.s32.totalorder %s25, %s41
    %p43 = scmp.eq.s32.totalorder %s17, 0
    %p44 = por %p42, %p43
    %s46 = sadd.s32 %s45, 1
    %p49 = scmp.eq.s32.totalorder %s11, 1
    %p50 = scmp.ne.s32.totalorder %s45, %s47
    %p51 = scmp.eq.s32.totalorder %s11, 0
    %p52 = por %p50, %p51
    %p53 = scmp.ne.s32.totalorder %s45, %s47
    %p54 = scmp.eq.s32.totalorder %s16, 1
    %p55 = por %p53, %p54
    %p56 = scmp.ne.s32.totalorder %s47, %s48
    %p57 = scmp.eq.s32.totalorder %s16, 0
    %p58 = por %p56, %p57
    %p59 = scmp.ne.s32.totalorder %s47, %s48
    %p60 = scmp.eq.s32.totalorder %s17, 1
    %p61 = por %p59, %p60
    %p63 = scmp.ne.s32.totalorder %s48, %s62
    %p64 = scmp.eq.s32.totalorder %s17, 0
    %p65 = por %p63, %p64
    %s67 = sadd.s32 %s66, 1
    %p70 = scmp.eq.s32.totalorder %s11, 1
    %p71 = scmp.ne.s32.totalorder %s66, %s68
    %p72 = scmp.eq.s32.totalorder %s11, 0
    %p73 = por %p71, %p72
    %p74 = scmp.ne.s32.totalorder %s66, %s68
    %p75 = scmp.eq.s32.totalorder %s16, 1
    %p76 = por %p74, %p75
    %p77 = scmp.ne.s32.totalorder %s68, %s69
    %p78 = scmp.eq.s32.totalorder %s16, 0
    %p79 = por %p77, %p78
    %p80 = scmp.ne.s32.totalorder %s68, %s69
    %p81 = scmp.eq.s32.totalorder %s17, 1
    %p82 = por %p80, %p81
    %p84 = scmp.ne.s32.totalorder %s69, %s83
    %p85 = scmp.eq.s32.totalorder %s17, 0
    %p86 = por %p84, %p85
    %s88 = sadd.s32 %s87, 1
    %p91 = scmp.eq.s32.totalorder %s11, 1
    %p92 = scmp.ne.s32.totalorder %s87, %s89
    %p93 = scmp.eq.s32.totalorder %s11, 0
    %p94 = por %p92, %p93
    %p95 = scmp.ne.s32.totalorder %s87, %s89
    %p96 = scmp.eq.s32.totalorder %s16, 1
    %p97 = por %p95, %p96
    %p98 = scmp.ne.s32.totalorder %s89, %s90
    %p99 = scmp.eq.s32.totalorder %s16, 0
    %p100 = por %p98, %p99
    %p101 = scmp.ne.s32.totalorder %s89, %s90
    %p102 = scmp.eq.s32.totalorder %s17, 1
    %p103 = por %p101, %p102
    %p105 = scmp.ne.s32.totalorder %s90, %s104
    %p106 = scmp.eq.s32.totalorder %s17, 0
    %p107 = por %p105, %p106
    %s109 = sadd.s32 %s108, 1
    %p112 = scmp.eq.s32.totalorder %s11, 1
    %p113 = scmp.ne.s32.totalorder %s108, %s110
    %p114 = scmp.eq.s32.totalorder %s11, 0
    %p115 = por %p113, %p114
    %p116 = scmp.ne.s32.totalorder %s108, %s110
    %p117 = scmp.eq.s32.totalorder %s16, 1
    %p118 = por %p116, %p117
    %p119 = scmp.ne.s32.totalorder %s110, %s111
    %p120 = scmp.eq.s32.totalorder %s16, 0
    %p121 = por %p119, %p120
    %p122 = scmp.ne.s32.totalorder %s110, %s111
    %p123 = scmp.eq.s32.totalorder %s17, 1
    %p124 = por %p122, %p123
    %p126 = scmp.ne.s32.totalorder %s111, %s125
    %p127 = scmp.eq.s32.totalorder %s17, 0
    %p128 = por %p126, %p127
    %s129 = ssub.s32 %s11, %s18
    %p130 = scmp.eq.s32.totalorder %s129, 0
    %s132 = sadd.s32 %s131, 1
    %s133 = scalar_select %p130, %s131, %s132
    %p136 = pneg %p130
    %p137 = scmp.eq.s32.totalorder %s11, 1
    %p138 = por %p136, %p137
    %p139 = scmp.ne.s32.totalorder %s131, %s134
    %p140 = scmp.eq.s32.totalorder %s11, 0
    %p141 = por %p139, %p140
    %p142 = scmp.ne.s32.totalorder %s131, %s134
    %p143 = scmp.eq.s32.totalorder %s16, 1
    %p144 = por %p142, %p143
    %p145 = scmp.ne.s32.totalorder %s134, %s135
    %p146 = scmp.eq.s32.totalorder %s16, 0
    %p147 = por %p145, %p146
    %p148 = scmp.ne.s32.totalorder %s134, %s135
    %p149 = scmp.eq.s32.totalorder %s17, 1
    %p150 = por %p148, %p149
    %p152 = scmp.ne.s32.totalorder %s135, %s151
    %p153 = scmp.eq.s32.totalorder %s17, 0
    %p154 = por %p152, %p153
    %p155 = scmp.le.s32.totalorder 1, %s11
    %p156 = scmp.lt.s32.totalorder %s11, 3
    %p157 = pnand %p155, %p156
    %p158 = pneg %p157
    // Predicated region
    $region9: #{albert_linear_highway_forward.1} parent=5 // pred_check
      _
    $region10: #{albert_linear_highway_forward.1} parent=5 // pred_check_branch
      %160 = sbr.rel (%p157) target = $region12
    $region11: #{albert_linear_highway_forward.1} parent=5 // pred_region
      %s161 = ssub.s32 %s11, 1
      // Predicated region
      $region13: #{albert_linear_highway_forward.1} parent=11 // pred_check
        %p162 = pneg %p58
      $region14: #{albert_linear_highway_forward.1} parent=11 // pred_check_branch
        %164 = sbr.rel (%p162) target = $region16
      $region15: #{albert_linear_highway_forward.1} parent=11 // pred_region
        _
      $region16: #{albert_linear_highway_forward.1} parent=11 // pred_fallthru
        _
      // Predicated region
      $region17: #{albert_linear_highway_forward.1} parent=11 // pred_check
        %p165 = pneg %p79
      $region18: #{albert_linear_highway_forward.1} parent=11 // pred_check_branch
        %167 = sbr.rel (%p165) target = $region20
      $region19: #{albert_linear_highway_forward.1} parent=11 // pred_region
        _
      $region20: #{albert_linear_highway_forward.1} parent=11 // pred_fallthru
        _
      // Predicated region
      $region21: #{albert_linear_highway_forward.1} parent=11 // pred_check
        %p168 = pneg %p100
      $region22: #{albert_linear_highway_forward.1} parent=11 // pred_check_branch
        %170 = sbr.rel (%p168) target = $region24
      $region23: #{albert_linear_highway_forward.1} parent=11 // pred_region
        _
      $region24: #{albert_linear_highway_forward.1} parent=11 // pred_fallthru
        _
      // Predicated region
      $region25: #{albert_linear_highway_forward.1} parent=11 // pred_check
        %p171 = pneg %p121
      $region26: #{albert_linear_highway_forward.1} parent=11 // pred_check_branch
        %173 = sbr.rel (%p171) target = $region28
      $region27: #{albert_linear_highway_forward.1} parent=11 // pred_region
        _
      $region28: #{albert_linear_highway_forward.1} parent=11 // pred_fallthru
        _
    $region12: #{albert_linear_highway_forward.1} parent=5 // pred_fallthru
      _
    %p174 = scmp.lt.s32.totalorder %s11, 2
    // Predicated region
    $region29: #{albert_linear_highway_forward.1} parent=5 // pred_check
      %p175 = pneg %p174
    $region30: #{albert_linear_highway_forward.1} parent=5 // pred_check_branch
      %177 = sbr.rel (%p175) target = $region32
    $region31: #{albert_linear_highway_forward.1} parent=5 // pred_region
      // Predicated region
      $region33: #{albert_linear_highway_forward.1} parent=31 // pred_check
        %p178 = pneg %p31
      $region34: #{albert_linear_highway_forward.1} parent=31 // pred_check_branch
        %180 = sbr.rel (%p178) target = $region36
      $region35: #{albert_linear_highway_forward.1} parent=31 // pred_region
        %s181 = smul.u32 32, %s11
        %p182 = scmp.lt.s32.totalorder %s181, 63
        %s183 = scalar_select %p182, %s181, 63
        %s184 = smul.addr %s183, 8
        %s185 = scalar_lea.vmem %s0, %s184
        %s186 = smul.u32 32, %s11
      $region36: #{albert_linear_highway_forward.1} parent=31 // pred_fallthru
        _
    $region32: #{albert_linear_highway_forward.1} parent=5 // pred_fallthru
      _
    %p187 = scmp.le.s32.totalorder 1, %s11
    %p188 = scmp.lt.s32.totalorder %s11, 3
    %p189 = pnand %p187, %p188
    %p190 = pneg %p189
    // Predicated region
    $region37: #{albert_linear_highway_forward.1} parent=5 // pred_check
      _
    $region38: #{albert_linear_highway_forward.1} parent=5 // pred_check_branch
      %192 = sbr.rel (%p189) target = $region40
    $region39: #{albert_linear_highway_forward.1} parent=5 // pred_region
      %s193 = ssub.s32 %s11, 1
      %s194 = smul.u32 32, %s16
      %p195 = scmp.lt.s32.totalorder %s194, 63
      %s196 = scalar_select %p195, %s194, 63
      %s197 = smul.addr %s196, 8
      %s198 = scalar_lea.vmem %s0, %s197
      %p199 = pneg %p37
      %p200 = pneg %p34
      %p201 = pneg %p58
      %p202 = pneg %p55
      %p203 = pneg %p79
      %p204 = pneg %p76
      %p205 = pneg %p100
      %p206 = pneg %p97
      %p207 = pneg %p121
      %p208 = pneg %p118
      %p209 = pneg %p147
      %p210 = pneg %p144
      %s211 = smul.u32 2, %s16
      %p212 = scmp.lt.s32.totalorder %s211, 3
      %s213 = scalar_select %p212, %s211, 3
      %s214 = smul.addr %s213, 2
      %s215 = scalar_lea.vmem %s5, %s214
      %s216 = smul.u32 32, %s16
      %p217 = scmp.lt.s32.totalorder %s216, 63
      %s218 = scalar_select %p217, %s216, 63
      %s219 = smul.addr %s218, 8
      %s220 = scalar_lea.vmem %s0, %s219
      %s221 = smul.u32 32, %s16
      %s222 = smul.u32 2, %s16
      %p223 = scmp.lt.s32.totalorder %s222, 3
      %s224 = scalar_select %p223, %s222, 3
      %s225 = smul.addr %s224, 2
      %s226 = scalar_lea.vmem %s5, %s225
      %s227 = smul.u32 2, %s16
      %v229 = vld [vmem:[%s220] sm:$0xff]
      %v230 = vld [vmem:[%s220 + $0x8] sm:$0xff]
      %v231 = vld [vmem:[%s220 + $0x10] sm:$0xff]
      %v232 = vld [vmem:[%s220 + $0x18] sm:$0xff]
      %v233 = vld [vmem:[%s220 + $0x20] sm:$0xff]
      %v234 = vld [vmem:[%s220 + $0x28] sm:$0xff]
      %v235 = vld [vmem:[%s220 + $0x30] sm:$0xff]
      %v236 = vld [vmem:[%s220 + $0x38] sm:$0xff]
      %v237 = vld [vmem:[%s220 + $0x40] sm:$0xff]
      %v238 = vld [vmem:[%s220 + $0x48] sm:$0xff]
      %v239 = vld [vmem:[%s220 + $0x50] sm:$0xff]
      %v240 = vld [vmem:[%s220 + $0x58] sm:$0xff]
      %v241 = vld [vmem:[%s220 + $0x60] sm:$0xff]
      %v242 = vld [vmem:[%s220 + $0x68] sm:$0xff]
      %v243 = vld [vmem:[%s220 + $0x70] sm:$0xff]
      %v244 = vld [vmem:[%s220 + $0x78] sm:$0xff]
      %v245 = vld [vmem:[%s220 + $0x80] sm:$0xff]
      %v246 = vld [vmem:[%s220 + $0x88] sm:$0xff]
      %v247 = vld [vmem:[%s220 + $0x90] sm:$0xff]
      %v248 = vld [vmem:[%s220 + $0x98] sm:$0xff]
      %v249 = vld [vmem:[%s220 + $0xa0] sm:$0xff]
      %v250 = vld [vmem:[%s220 + $0xa8] sm:$0xff]
      %v251 = vld [vmem:[%s220 + $0xb0] sm:$0xff]
      %v252 = vld [vmem:[%s220 + $0xb8] sm:$0xff]
      %v253 = vld [vmem:[%s220 + $0xc0] sm:$0xff]
      %v254 = vld [vmem:[%s220 + $0xc8] sm:$0xff]
      %v255 = vld [vmem:[%s220 + $0xd0] sm:$0xff]
      %v256 = vld [vmem:[%s220 + $0xd8] sm:$0xff]
      %v257 = vld [vmem:[%s220 + $0xe0] sm:$0xff]
      %v258 = vld [vmem:[%s220 + $0xe8] sm:$0xff]
      %v259 = vld [vmem:[%s220 + $0xf0] sm:$0xff]
      %v260 = vld [vmem:[%s220 + $0xf8] sm:$0xff]
      %v261 = vpack.c.bf16 %v230, %v229
      %v262 = vpack.c.bf16 %v232, %v231
      %v263 = vpack.c.bf16 %v234, %v233
      %v264 = vpack.c.bf16 %v236, %v235
      %v265 = vpack.c.bf16 %v238, %v237
      %v266 = vpack.c.bf16 %v240, %v239
      %v267 = vpack.c.bf16 %v242, %v241
      %v268 = vpack.c.bf16 %v244, %v243
      %v269 = vpack.c.bf16 %v246, %v245
      %v270 = vpack.c.bf16 %v248, %v247
      %v271 = vpack.c.bf16 %v250, %v249
      %v272 = vpack.c.bf16 %v252, %v251
      %v273 = vpack.c.bf16 %v254, %v253
      %v274 = vpack.c.bf16 %v256, %v255
      %v275 = vpack.c.bf16 %v258, %v257
      %v276 = vpack.c.bf16 %v260, %v259
      %v277 = vld [vmem:[%s1] sm:$0xff]
      %v278 = vld [vmem:[%s1 + $0x8] sm:$0xff]
      %v279 = vld [vmem:[%s1 + $0x10] sm:$0xff]
      %v280 = vld [vmem:[%s1 + $0x18] sm:$0xff]
      %v281 = vld [vmem:[%s1 + $0x20] sm:$0xff]
      %v282 = vld [vmem:[%s1 + $0x28] sm:$0xff]
      %v283 = vld [vmem:[%s1 + $0x30] sm:$0xff]
      %v284 = vld [vmem:[%s1 + $0x38] sm:$0xff]
      %v285 = vld [vmem:[%s1 + $0x40] sm:$0xff]
      %v286 = vld [vmem:[%s1 + $0x48] sm:$0xff]
      %v287 = vld [vmem:[%s1 + $0x50] sm:$0xff]
      %v288 = vld [vmem:[%s1 + $0x58] sm:$0xff]
      %v289 = vld [vmem:[%s1 + $0x60] sm:$0xff]
      %v290 = vld [vmem:[%s1 + $0x68] sm:$0xff]
      %v291 = vld [vmem:[%s1 + $0x70] sm:$0xff]
      %v292 = vld [vmem:[%s1 + $0x78] sm:$0xff]
      %v293 = vld [vmem:[%s2] sm:$0x3]
      %v295 = vlaneseq
      %v296 = vshrl.u32 %v295, 7
      %v297 = vsub.s32 0, %v296
      %v298 = vrot.slane %v293, %v297
      %v299 = vlaneseq
      %v300 = vshrl.u32 %v299, 7
      %v301 = vsub.s32 1, %v300
      %v302 = vrot.slane %v293, %v301
      %v321 = vunpack.c.l.b16 %v277
      %v322 = vunpack.c.h.b16 %v277
      %v323 = vunpack.c.l.b16 %v278
      %v324 = vunpack.c.h.b16 %v278
      %v325 = vunpack.c.l.b16 %v279
      %v326 = vunpack.c.h.b16 %v279
      %v327 = vunpack.c.l.b16 %v280
      %v328 = vunpack.c.h.b16 %v280
      %v329 = vunpack.c.l.b16 %v281
      %v330 = vunpack.c.h.b16 %v281
      %v331 = vunpack.c.l.b16 %v282
      %v332 = vunpack.c.h.b16 %v282
      %v333 = vunpack.c.l.b16 %v283
      %v334 = vunpack.c.h.b16 %v283
      %v335 = vunpack.c.l.b16 %v284
      %v336 = vunpack.c.h.b16 %v284
      %v337 = vunpack.c.l.b16 %v285
      %v338 = vunpack.c.h.b16 %v285
      %v339 = vunpack.c.l.b16 %v286
      %v340 = vunpack.c.h.b16 %v286
      %v341 = vunpack.c.l.b16 %v287
      %v342 = vunpack.c.h.b16 %v287
      %v343 = vunpack.c.l.b16 %v288
      %v344 = vunpack.c.h.b16 %v288
      %v345 = vunpack.c.l.b16 %v289
      %v346 = vunpack.c.h.b16 %v289
      %v347 = vunpack.c.l.b16 %v290
      %v348 = vunpack.c.h.b16 %v290
      %v349 = vunpack.c.l.b16 %v291
      %v350 = vunpack.c.h.b16 %v291
      %v351 = vunpack.c.l.b16 %v292
      %v352 = vunpack.c.h.b16 %v292
      %v353 = vpack.c.b16 %v323, %v321
      %v354 = vpack.c.b16 %v324, %v322
      %v355 = vpack.c.b16 %v327, %v325
      %v356 = vpack.c.b16 %v328, %v326
      %v357 = vpack.c.b16 %v331, %v329
      %v358 = vpack.c.b16 %v332, %v330
      %v359 = vpack.c.b16 %v335, %v333
      %v360 = vpack.c.b16 %v336, %v334
      %v361 = vpack.c.b16 %v339, %v337
      %v362 = vpack.c.b16 %v340, %v338
      %v363 = vpack.c.b16 %v343, %v341
      %v364 = vpack.c.b16 %v344, %v342
      %v365 = vpack.c.b16 %v347, %v345
      %v366 = vpack.c.b16 %v348, %v346
      %v367 = vpack.c.b16 %v351, %v349
      %v368 = vpack.c.b16 %v352, %v350
      %385 = vmatprep.subr.bf16.mxu0 %v354
      %386 = vmatpush1.bf16.msra.mxu0 %v353
      %387 = vmatprep.subr.bf16.mxu0 %v356
      %388 = vmatpush1.bf16.msra.mxu0 %v355
      %389 = vmatprep.subr.bf16.mxu0 %v358
      %390 = vmatpush1.bf16.msra.mxu0 %v357
      %391 = vmatprep.subr.bf16.mxu0 %v360
      %392 = vmatpush1.bf16.msra.mxu0 %v359
      %393 = vmatprep.subr.bf16.mxu0 %v362
      %394 = vmatpush1.bf16.msra.mxu0 %v361
      %395 = vmatprep.subr.bf16.mxu0 %v364
      %396 = vmatpush1.bf16.msra.mxu0 %v363
      %397 = vmatprep.subr.bf16.mxu0 %v366
      %398 = vmatpush1.bf16.msra.mxu0 %v365
      %399 = vmatprep.subr.bf16.mxu0 %v368
      %400 = vmatpush1.bf16.msra.mxu0 %v367
      %401 = vmatprep.subr.bf16.mxu0 0
      %402 = vmatpush1.bf16.msra.mxu0 0
      %403 = vmatprep.subr.bf16.mxu0 0
      %404 = vmatpush1.bf16.msra.mxu0 0
      %405 = vmatprep.subr.bf16.mxu0 0
      %406 = vmatpush1.bf16.msra.mxu0 0
      %407 = vmatprep.subr.bf16.mxu0 0
      %408 = vmatpush1.bf16.msra.mxu0 0
      %409 = vmatprep.subr.bf16.mxu0 0
      %410 = vmatpush1.bf16.msra.mxu0 0
      %411 = vmatprep.subr.bf16.mxu0 0
      %412 = vmatpush1.bf16.msra.mxu0 0
      %413 = vmatprep.subr.bf16.mxu0 0
      %414 = vmatpush1.bf16.msra.mxu0 0
      %415 = vmatprep.subr.bf16.mxu0 0
      %416 = vmatpush1.bf16.msra.mxu0 0
      %417 = vmatprep.mubr.bf16.mxu0 0
      %418 = vmatmul.mubr.bf16.gmra.mrb[0].mxu0 %v261
      %v419 = vpop.f32.mrb[0].mxu0
      %v420 = vadd.f32 %v298, %v419
      %v421 = vpop.f32.mrb[0].mxu0
      %v422 = vadd.f32 %v302, %v421
      %v423 = vpop.f32.mrb[0].mxu0
      %v424 = vadd.f32 %v298, %v423
      %v425 = vpop.f32.mrb[0].mxu0
      %v426 = vadd.f32 %v302, %v425
      %427 = vmatprep.mubr.bf16.mxu0 0
      %428 = vmatmul.mubr.bf16.gmra.mrb[0].mxu0 %v262
      %v429 = vpop.f32.mrb[0].mxu0
      %v430 = vadd.f32 %v298, %v429
      %v431 = vpop.f32.mrb[0].mxu0
      %v432 = vadd.f32 %v302, %v431
      %v433 = vpop.f32.mrb[0].mxu0
      %v434 = vadd.f32 %v298, %v433
      %v435 = vpop.f32.mrb[0].mxu0
      %v436 = vadd.f32 %v302, %v435
      %437 = vmatprep.mubr.bf16.mxu0 0
      %438 = vmatmul.mubr.bf16.gmra.mrb[0].mxu0 %v263
      %v439 = vpop.f32.mrb[0].mxu0
      %v440 = vadd.f32 %v298, %v439
      %v441 = vpop.f32.mrb[0].mxu0
      %v442 = vadd.f32 %v302, %v441
      %v443 = vpop.f32.mrb[0].mxu0
      %v444 = vadd.f32 %v298, %v443
      %v445 = vpop.f32.mrb[0].mxu0
      %v446 = vadd.f32 %v302, %v445
      %447 = vmatprep.mubr.bf16.mxu0 0
      %448 = vmatmul.mubr.bf16.gmra.mrb[0].mxu0 %v264
      %v449 = vpop.f32.mrb[0].mxu0
      %v450 = vadd.f32 %v298, %v449
      %v451 = vpop.f32.mrb[0].mxu0
      %v452 = vadd.f32 %v302, %v451
      %v453 = vpop.f32.mrb[0].mxu0
      %v454 = vadd.f32 %v298, %v453
      %v455 = vpop.f32.mrb[0].mxu0
      %v456 = vadd.f32 %v302, %v455
      %457 = vmatprep.mubr.bf16.mxu0 0
      %458 = vmatmul.mubr.bf16.gmra.mrb[0].mxu0 %v265
      %v459 = vpop.f32.mrb[0].mxu0
      %v460 = vadd.f32 %v298, %v459
      %v461 = vpop.f32.mrb[0].mxu0
      %v462 = vadd.f32 %v302, %v461
      %v463 = vpop.f32.mrb[0].mxu0
      %v464 = vadd.f32 %v298, %v463
      %v465 = vpop.f32.mrb[0].mxu0
      %v466 = vadd.f32 %v302, %v465
      %467 = vmatprep.mubr.bf16.mxu0 0
      %468 = vmatmul.mubr.bf16.gmra.mrb[0].mxu0 %v266
      %v469 = vpop.f32.mrb[0].mxu0
      %v470 = vadd.f32 %v298, %v469
      %v471 = vpop.f32.mrb[0].mxu0
      %v472 = vadd.f32 %v302, %v471
      %v473 = vpop.f32.mrb[0].mxu0
      %v474 = vadd.f32 %v298, %v473
      %v475 = vpop.f32.mrb[0].mxu0
      %v476 = vadd.f32 %v302, %v475
      %477 = vmatprep.mubr.bf16.mxu0 0
      %478 = vmatmul.mubr.bf16.gmra.mrb[0].mxu0 %v267
      %v479 = vpop.f32.mrb[0].mxu0
      %v480 = vadd.f32 %v298, %v479
      %v481 = vpop.f32.mrb[0].mxu0
      %v482 = vadd.f32 %v302, %v481
      %v483 = vpop.f32.mrb[0].mxu0
      %v484 = vadd.f32 %v298, %v483
      %v485 = vpop.f32.mrb[0].mxu0
      %v486 = vadd.f32 %v302, %v485
      %487 = vmatprep.mubr.bf16.mxu0 0
      %488 = vmatmul.mubr.bf16.gmra.mrb[0].mxu0 %v268
      %v489 = vpop.f32.mrb[0].mxu0
      %v490 = vadd.f32 %v298, %v489
      %v491 = vpop.f32.mrb[0].mxu0
      %v492 = vadd.f32 %v302, %v491
      %v493 = vpop.f32.mrb[0].mxu0
      %v494 = vadd.f32 %v298, %v493
      %v495 = vpop.f32.mrb[0].mxu0
      %v496 = vadd.f32 %v302, %v495
      %497 = vmatprep.mubr.bf16.mxu0 0
      %498 = vmatmul.mubr.bf16.gmra.mrb[0].mxu0 %v269
      %v499 = vpop.f32.mrb[0].mxu0
      %v500 = vadd.f32 %v298, %v499
      %v501 = vpop.f32.mrb[0].mxu0
      %v502 = vadd.f32 %v302, %v501
      %v503 = vpop.f32.mrb[0].mxu0
      %v504 = vadd.f32 %v298, %v503
      %v505 = vpop.f32.mrb[0].mxu0
      %v506 = vadd.f32 %v302, %v505
      %507 = vmatprep.mubr.bf16.mxu0 0
      %508 = vmatmul.mubr.bf16.gmra.mrb[0].mxu0 %v270
      %v509 = vpop.f32.mrb[0].mxu0
      %v510 = vadd.f32 %v298, %v509
      %v511 = vpop.f32.mrb[0].mxu0
      %v512 = vadd.f32 %v302, %v511
      %v513 = vpop.f32.mrb[0].mxu0
      %v514 = vadd.f32 %v298, %v513
      %v515 = vpop.f32.mrb[0].mxu0
      %v516 = vadd.f32 %v302, %v515
      %517 = vmatprep.mubr.bf16.mxu0 0
      %518 = vmatmul.mubr.bf16.gmra.mrb[0].mxu0 %v271
      %v519 = vpop.f32.mrb[0].mxu0
      %v520 = vadd.f32 %v298, %v519
      %v521 = vpop.f32.mrb[0].mxu0
      %v522 = vadd.f32 %v302, %v521
      %v523 = vpop.f32.mrb[0].mxu0
      %v524 = vadd.f32 %v298, %v523
      %v525 = vpop.f32.mrb[0].mxu0
      %v526 = vadd.f32 %v302, %v525
      %527 = vmatprep.mubr.bf16.mxu0 0
      %528 = vmatmul.mubr.bf16.gmra.mrb[0].mxu0 %v272
      %v529 = vpop.f32.mrb[0].mxu0
      %v530 = vadd.f32 %v298, %v529
      %v531 = vpop.f32.mrb[0].mxu0
      %v532 = vadd.f32 %v302, %v531
      %v533 = vpop.f32.mrb[0].mxu0
      %v534 = vadd.f32 %v298, %v533
      %v535 = vpop.f32.mrb[0].mxu0
      %v536 = vadd.f32 %v302, %v535
      %537 = vmatprep.mubr.bf16.mxu0 0
      %538 = vmatmul.mubr.bf16.gmra.mrb[0].mxu0 %v273
      %v539 = vpop.f32.mrb[0].mxu0
      %v540 = vadd.f32 %v298, %v539
      %v541 = vpop.f32.mrb[0].mxu0
      %v542 = vadd.f32 %v302, %v541
      %v543 = vpop.f32.mrb[0].mxu0
      %v544 = vadd.f32 %v298, %v543
      %v545 = vpop.f32.mrb[0].mxu0
      %v546 = vadd.f32 %v302, %v545
      %547 = vmatprep.mubr.bf16.mxu0 0
      %548 = vmatmul.mubr.bf16.gmra.mrb[0].mxu0 %v274
      %v549 = vpop.f32.mrb[0].mxu0
      %v550 = vadd.f32 %v298, %v549
      %v551 = vpop.f32.mrb[0].mxu0
      %v552 = vadd.f32 %v302, %v551
      %v553 = vpop.f32.mrb[0].mxu0
      %v554 = vadd.f32 %v298, %v553
      %v555 = vpop.f32.mrb[0].mxu0
      %v556 = vadd.f32 %v302, %v555
      %557 = vmatprep.mubr.bf16.mxu0 0
      %558 = vmatmul.mubr.bf16.gmra.mrb[0].mxu0 %v275
      %v559 = vpop.f32.mrb[0].mxu0
      %v560 = vadd.f32 %v298, %v559
      %v561 = vpop.f32.mrb[0].mxu0
      %v562 = vadd.f32 %v302, %v561
      %v563 = vpop.f32.mrb[0].mxu0
      %v564 = vadd.f32 %v298, %v563
      %v565 = vpop.f32.mrb[0].mxu0
      %v566 = vadd.f32 %v302, %v565
      %567 = vmatprep.mubr.bf16.mxu0 0
      %568 = vmatmul.mubr.bf16.gmra.mrb[0].mxu0 %v276
      %v569 = vpop.f32.mrb[0].mxu0
      %v570 = vadd.f32 %v298, %v569
      %v571 = vpop.f32.mrb[0].mxu0
      %v572 = vadd.f32 %v302, %v571
      %v573 = vpop.f32.mrb[0].mxu0
      %v574 = vadd.f32 %v298, %v573
      %v575 = vpop.f32.mrb[0].mxu0
      %v576 = vadd.f32 %v302, %v575
      %577 = vdwg.mxu0
      %v578 = vxor.u32 %v420, 2147483648
      %v579 = vxor.u32 %v424, 2147483648
      %v580 = vxor.u32 %v430, 2147483648
      %v581 = vxor.u32 %v434, 2147483648
      %v582 = vxor.u32 %v440, 2147483648
      %v583 = vxor.u32 %v444, 2147483648
      %v584 = vxor.u32 %v450, 2147483648
      %v585 = vxor.u32 %v454, 2147483648
      %v586 = vxor.u32 %v460, 2147483648
      %v587 = vxor.u32 %v464, 2147483648
      %v588 = vxor.u32 %v470, 2147483648
      %v589 = vxor.u32 %v474, 2147483648
      %v590 = vxor.u32 %v480, 2147483648
      %v591 = vxor.u32 %v484, 2147483648
      %v592 = vxor.u32 %v490, 2147483648
      %v593 = vxor.u32 %v494, 2147483648
      %v594 = vxor.u32 %v500, 2147483648
      %v595 = vxor.u32 %v504, 2147483648
      %v596 = vxor.u32 %v510, 2147483648
      %v597 = vxor.u32 %v514, 2147483648
      %v598 = vxor.u32 %v520, 2147483648
      %v599 = vxor.u32 %v524, 2147483648
      %v600 = vxor.u32 %v530, 2147483648
      %v601 = vxor.u32 %v534, 2147483648
      %v602 = vxor.u32 %v540, 2147483648
      %v603 = vxor.u32 %v544, 2147483648
      %v604 = vxor.u32 %v550, 2147483648
      %v605 = vxor.u32 %v554, 2147483648
      %v606 = vxor.u32 %v560, 2147483648
      %v607 = vxor.u32 %v564, 2147483648
      %v608 = vxor.u32 %v570, 2147483648
      %v609 = vxor.u32 %v574, 2147483648
      %v610 = vmul.f32 %v578, 1.442695
      %v611 = vpow.pop %v610
      %v612 = vmul.f32 %v579, 1.442695
      %v613 = vpow.pop %v612
      %v614 = vmul.f32 %v580, 1.442695
      %v615 = vpow.pop %v614
      %v616 = vmul.f32 %v581, 1.442695
      %v617 = vpow.pop %v616
      %v618 = vmul.f32 %v582, 1.442695
      %v619 = vpow.pop %v618
      %v620 = vmul.f32 %v583, 1.442695
      %v621 = vpow.pop %v620
      %v622 = vmul.f32 %v584, 1.442695
      %v623 = vpow.pop %v622
      %v624 = vmul.f32 %v585, 1.442695
      %v625 = vpow.pop %v624
      %v626 = vmul.f32 %v586, 1.442695
      %v627 = vpow.pop %v626
      %v628 = vmul.f32 %v587, 1.442695
      %v629 = vpow.pop %v628
      %v630 = vmul.f32 %v588, 1.442695
      %v631 = vpow.pop %v630
      %v632 = vmul.f32 %v589, 1.442695
      %v633 = vpow.pop %v632
      %v634 = vmul.f32 %v590, 1.442695
      %v635 = vpow.pop %v634
      %v636 = vmul.f32 %v591, 1.442695
      %v637 = vpow.pop %v636
      %v638 = vmul.f32 %v592, 1.442695
      %v639 = vpow.pop %v638
      %v640 = vmul.f32 %v593, 1.442695
      %v641 = vpow.pop %v640
      %v642 = vmul.f32 %v594, 1.442695
      %v643 = vpow.pop %v642
      %v644 = vmul.f32 %v595, 1.442695
      %v645 = vpow.pop %v644
      %v646 = vmul.f32 %v596, 1.442695
      %v647 = vpow.pop %v646
      %v648 = vmul.f32 %v597, 1.442695
      %v649 = vpow.pop %v648
      %v650 = vmul.f32 %v598, 1.442695
      %v651 = vpow.pop %v650
      %v652 = vmul.f32 %v599, 1.442695
      %v653 = vpow.pop %v652
      %v654 = vmul.f32 %v600, 1.442695
      %v655 = vpow.pop %v654
      %v656 = vmul.f32 %v601, 1.442695
      %v657 = vpow.pop %v656
      %v658 = vmul.f32 %v602, 1.442695
      %v659 = vpow.pop %v658
      %v660 = vmul.f32 %v603, 1.442695
      %v661 = vpow.pop %v660
      %v662 = vmul.f32 %v604, 1.442695
      %v663 = vpow.pop %v662
      %v664 = vmul.f32 %v605, 1.442695
      %v665 = vpow.pop %v664
      %v666 = vmul.f32 %v606, 1.442695
      %v667 = vpow.pop %v666
      %v668 = vmul.f32 %v607, 1.442695
      %v669 = vpow.pop %v668
      %v670 = vmul.f32 %v608, 1.442695
      %v671 = vpow.pop %v670
      %v672 = vmul.f32 %v609, 1.442695
      %v673 = vpow.pop %v672
      %v674 = vadd.f32 %v611, 1.0
      %v675 = vadd.f32 %v613, 1.0
      %v676 = vadd.f32 %v615, 1.0
      %v677 = vadd.f32 %v617, 1.0
      %v678 = vadd.f32 %v619, 1.0
      %v679 = vadd.f32 %v621, 1.0
      %v680 = vadd.f32 %v623, 1.0
      %v681 = vadd.f32 %v625, 1.0
      %v682 = vadd.f32 %v627, 1.0
      %v683 = vadd.f32 %v629, 1.0
      %v684 = vadd.f32 %v631, 1.0
      %v685 = vadd.f32 %v633, 1.0
      %v686 = vadd.f32 %v635, 1.0
      %v687 = vadd.f32 %v637, 1.0
      %v688 = vadd.f32 %v639, 1.0
      %v689 = vadd.f32 %v641, 1.0
      %v690 = vadd.f32 %v643, 1.0
      %v691 = vadd.f32 %v645, 1.0
      %v692 = vadd.f32 %v647, 1.0
      %v693 = vadd.f32 %v649, 1.0
      %v694 = vadd.f32 %v651, 1.0
      %v695 = vadd.f32 %v653, 1.0
      %v696 = vadd.f32 %v655, 1.0
      %v697 = vadd.f32 %v657, 1.0
      %v698 = vadd.f32 %v659, 1.0
      %v699 = vadd.f32 %v661, 1.0
      %v700 = vadd.f32 %v663, 1.0
      %v701 = vadd.f32 %v665, 1.0
      %v702 = vadd.f32 %v667, 1.0
      %v703 = vadd.f32 %v669, 1.0
      %v704 = vadd.f32 %v671, 1.0
      %v705 = vadd.f32 %v673, 1.0
      %v706 = vrcp.pop %v674
      %v707 = vmul.f32 1.0, %v706
      %v708 = vrcp.pop %v675
      %v709 = vmul.f32 1.0, %v708
      %v710 = vrcp.pop %v676
      %v711 = vmul.f32 1.0, %v710
      %v712 = vrcp.pop %v677
      %v713 = vmul.f32 1.0, %v712
      %v714 = vrcp.pop %v678
      %v715 = vmul.f32 1.0, %v714
      %v716 = vrcp.pop %v679
      %v717 = vmul.f32 1.0, %v716
      %v718 = vrcp.pop %v680
      %v719 = vmul.f32 1.0, %v718
      %v720 = vrcp.pop %v681
      %v721 = vmul.f32 1.0, %v720
      %v722 = vrcp.pop %v682
      %v723 = vmul.f32 1.0, %v722
      %v724 = vrcp.pop %v683
      %v725 = vmul.f32 1.0, %v724
      %v726 = vrcp.pop %v684
      %v727 = vmul.f32 1.0, %v726
      %v728 = vrcp.pop %v685
      %v729 = vmul.f32 1.0, %v728
      %v730 = vrcp.pop %v686
      %v731 = vmul.f32 1.0, %v730
      %v732 = vrcp.pop %v687
      %v733 = vmul.f32 1.0, %v732
      %v734 = vrcp.pop %v688
      %v735 = vmul.f32 1.0, %v734
      %v736 = vrcp.pop %v689
      %v737 = vmul.f32 1.0, %v736
      %v738 = vrcp.pop %v690
      %v739 = vmul.f32 1.0, %v738
      %v740 = vrcp.pop %v691
      %v741 = vmul.f32 1.0, %v740
      %v742 = vrcp.pop %v692
      %v743 = vmul.f32 1.0, %v742
      %v744 = vrcp.pop %v693
      %v745 = vmul.f32 1.0, %v744
      %v746 = vrcp.pop %v694
      %v747 = vmul.f32 1.0, %v746
      %v748 = vrcp.pop %v695
      %v749 = vmul.f32 1.0, %v748
      %v750 = vrcp.pop %v696
      %v751 = vmul.f32 1.0, %v750
      %v752 = vrcp.pop %v697
      %v753 = vmul.f32 1.0, %v752
      %v754 = vrcp.pop %v698
      %v755 = vmul.f32 1.0, %v754
      %v756 = vrcp.pop %v699
      %v757 = vmul.f32 1.0, %v756
      %v758 = vrcp.pop %v700
      %v759 = vmul.f32 1.0, %v758
      %v760 = vrcp.pop %v701
      %v761 = vmul.f32 1.0, %v760
      %v762 = vrcp.pop %v702
      %v763 = vmul.f32 1.0, %v762
      %v764 = vrcp.pop %v703
      %v765 = vmul.f32 1.0, %v764
      %v766 = vrcp.pop %v704
      %v767 = vmul.f32 1.0, %v766
      %v768 = vrcp.pop %v705
      %v769 = vmul.f32 1.0, %v768
      %v770 = vmax.f32 %v422, 0.0
      %v771 = vmax.f32 %v426, 0.0
      %v772 = vmax.f32 %v432, 0.0
      %v773 = vmax.f32 %v436, 0.0
      %v774 = vmax.f32 %v442, 0.0
      %v775 = vmax.f32 %v446, 0.0
      %v776 = vmax.f32 %v452, 0.0
      %v777 = vmax.f32 %v456, 0.0
      %v778 = vmax.f32 %v462, 0.0
      %v779 = vmax.f32 %v466, 0.0
      %v780 = vmax.f32 %v472, 0.0
      %v781 = vmax.f32 %v476, 0.0
      %v782 = vmax.f32 %v482, 0.0
      %v783 = vmax.f32 %v486, 0.0
      %v784 = vmax.f32 %v492, 0.0
      %v785 = vmax.f32 %v496, 0.0
      %v786 = vmax.f32 %v502, 0.0
      %v787 = vmax.f32 %v506, 0.0
      %v788 = vmax.f32 %v512, 0.0
      %v789 = vmax.f32 %v516, 0.0
      %v790 = vmax.f32 %v522, 0.0
      %v791 = vmax.f32 %v526, 0.0
      %v792 = vmax.f32 %v532, 0.0
      %v793 = vmax.f32 %v536, 0.0
      %v794 = vmax.f32 %v542, 0.0
      %v795 = vmax.f32 %v546, 0.0
      %v796 = vmax.f32 %v552, 0.0
      %v797 = vmax.f32 %v556, 0.0
      %v798 = vmax.f32 %v562, 0.0
      %v799 = vmax.f32 %v566, 0.0
      %v800 = vmax.f32 %v572, 0.0
      %v801 = vmax.f32 %v576, 0.0
      %v802 = vsub.f32 %v770, %v229
      %v803 = vsub.f32 %v771, %v230
      %v804 = vsub.f32 %v772, %v231
      %v805 = vsub.f32 %v773, %v232
      %v806 = vsub.f32 %v774, %v233
      %v807 = vsub.f32 %v775, %v234
      %v808 = vsub.f32 %v776, %v235
      %v809 = vsub.f32 %v777, %v236
      %v810 = vsub.f32 %v778, %v237
      %v811 = vsub.f32 %v779, %v238
      %v812 = vsub.f32 %v780, %v239
      %v813 = vsub.f32 %v781, %v240
      %v814 = vsub.f32 %v782, %v241
      %v815 = vsub.f32 %v783, %v242
      %v816 = vsub.f32 %v784, %v243
      %v817 = vsub.f32 %v785, %v244
      %v818 = vsub.f32 %v786, %v245
      %v819 = vsub.f32 %v787, %v246
      %v820 = vsub.f32 %v788, %v247
      %v821 = vsub.f32 %v789, %v248
      %v822 = vsub.f32 %v790, %v249
      %v823 = vsub.f32 %v791, %v250
      %v824 = vsub.f32 %v792, %v251
      %v825 = vsub.f32 %v793, %v252
      %v826 = vsub.f32 %v794, %v253
      %v827 = vsub.f32 %v795, %v254
      %v828 = vsub.f32 %v796, %v255
      %v829 = vsub.f32 %v797, %v256
      %v830 = vsub.f32 %v798, %v257
      %v831 = vsub.f32 %v799, %v258
      %v832 = vsub.f32 %v800, %v259
      %v833 = vsub.f32 %v801, %v260
      %v834 = vmul.f32 %v707, %v802
      %v835 = vmul.f32 %v709, %v803
      %v836 = vmul.f32 %v711, %v804
      %v837 = vmul.f32 %v713, %v805
      %v838 = vmul.f32 %v715, %v806
      %v839 = vmul.f32 %v717, %v807
      %v840 = vmul.f32 %v719, %v808
      %v841 = vmul.f32 %v721, %v809
      %v842 = vmul.f32 %v723, %v810
      %v843 = vmul.f32 %v725, %v811
      %v844 = vmul.f32 %v727, %v812
      %v845 = vmul.f32 %v729, %v813
      %v846 = vmul.f32 %v731, %v814
      %v847 = vmul.f32 %v733, %v815
      %v848 = vmul.f32 %v735, %v816
      %v849 = vmul.f32 %v737, %v817
      %v850 = vmul.f32 %v739, %v818
      %v851 = vmul.f32 %v741, %v819
      %v852 = vmul.f32 %v743, %v820
      %v853 = vmul.f32 %v745, %v821
      %v854 = vmul.f32 %v747, %v822
      %v855 = vmul.f32 %v749, %v823
      %v856 = vmul.f32 %v751, %v824
      %v857 = vmul.f32 %v753, %v825
      %v858 = vmul.f32 %v755, %v826
      %v859 = vmul.f32 %v757, %v827
      %v860 = vmul.f32 %v759, %v828
      %v861 = vmul.f32 %v761, %v829
      %v862 = vmul.f32 %v763, %v830
      %v863 = vmul.f32 %v765, %v831
      %v864 = vmul.f32 %v767, %v832
      %v865 = vmul.f32 %v769, %v833
      %v866 = vadd.f32 %v229, %v834
      %v867 = vadd.f32 %v230, %v835
      %v868 = vadd.f32 %v231, %v836
      %v869 = vadd.f32 %v232, %v837
      %v870 = vadd.f32 %v233, %v838
      %v871 = vadd.f32 %v234, %v839
      %v872 = vadd.f32 %v235, %v840
      %v873 = vadd.f32 %v236, %v841
      %v874 = vadd.f32 %v237, %v842
      %v875 = vadd.f32 %v238, %v843
      %v876 = vadd.f32 %v239, %v844
      %v877 = vadd.f32 %v240, %v845
      %v878 = vadd.f32 %v241, %v846
      %v879 = vadd.f32 %v242, %v847
      %v880 = vadd.f32 %v243, %v848
      %v881 = vadd.f32 %v244, %v849
      %v882 = vadd.f32 %v245, %v850
      %v883 = vadd.f32 %v246, %v851
      %v884 = vadd.f32 %v247, %v852
      %v885 = vadd.f32 %v248, %v853
      %v886 = vadd.f32 %v249, %v854
      %v887 = vadd.f32 %v250, %v855
      %v888 = vadd.f32 %v251, %v856
      %v889 = vadd.f32 %v252, %v857
      %v890 = vadd.f32 %v253, %v858
      %v891 = vadd.f32 %v254, %v859
      %v892 = vadd.f32 %v255, %v860
      %v893 = vadd.f32 %v256, %v861
      %v894 = vadd.f32 %v257, %v862
      %v895 = vadd.f32 %v258, %v863
      %v896 = vadd.f32 %v259, %v864
      %v897 = vadd.f32 %v260, %v865
      %v898 = vpack.c.bf16 %v867, %v866
      %v899 = vpack.c.bf16 %v869, %v868
      %v900 = vpack.c.bf16 %v871, %v870
      %v901 = vpack.c.bf16 %v873, %v872
      %v902 = vpack.c.bf16 %v875, %v874
      %v903 = vpack.c.bf16 %v877, %v876
      %v904 = vpack.c.bf16 %v879, %v878
      %v905 = vpack.c.bf16 %v881, %v880
      %v906 = vpack.c.bf16 %v883, %v882
      %v907 = vpack.c.bf16 %v885, %v884
      %v908 = vpack.c.bf16 %v887, %v886
      %v909 = vpack.c.bf16 %v889, %v888
      %v910 = vpack.c.bf16 %v891, %v890
      %v911 = vpack.c.bf16 %v893, %v892
      %v912 = vpack.c.bf16 %v895, %v894
      %v913 = vpack.c.bf16 %v897, %v896
      %s914 = scalar_lea.vmem %s1, 128
      %v915 = vld [vmem:[%s914] sm:$0xff]
      %v916 = vld [vmem:[%s914 + $0x8] sm:$0xff]
      %v917 = vld [vmem:[%s914 + $0x10] sm:$0xff]
      %v918 = vld [vmem:[%s914 + $0x18] sm:$0xff]
      %v919 = vld [vmem:[%s914 + $0x20] sm:$0xff]
      %v920 = vld [vmem:[%s914 + $0x28] sm:$0xff]
      %v921 = vld [vmem:[%s914 + $0x30] sm:$0xff]
      %v922 = vld [vmem:[%s914 + $0x38] sm:$0xff]
      %v923 = vld [vmem:[%s914 + $0x40] sm:$0xff]
      %v924 = vld [vmem:[%s914 + $0x48] sm:$0xff]
      %v925 = vld [vmem:[%s914 + $0x50] sm:$0xff]
      %v926 = vld [vmem:[%s914 + $0x58] sm:$0xff]
      %v927 = vld [vmem:[%s914 + $0x60] sm:$0xff]
      %v928 = vld [vmem:[%s914 + $0x68] sm:$0xff]
      %v929 = vld [vmem:[%s914 + $0x70] sm:$0xff]
      %v930 = vld [vmem:[%s914 + $0x78] sm:$0xff]
      %s931 = scalar_lea.vmem %s2, 2
      %v932 = vld [vmem:[%s931] sm:$0x3]
      %v934 = vlaneseq
      %v935 = vshrl.u32 %v934, 7
      %v936 = vsub.s32 0, %v935
      %v937 = vrot.slane %v932, %v936
      %v938 = vlaneseq
      %v939 = vshrl.u32 %v938, 7
      %v940 = vsub.s32 1, %v939
      %v941 = vrot.slane %v932, %v940
      %v960 = vunpack.c.l.b16 %v915
      %v961 = vunpack.c.h.b16 %v915
      %v962 = vunpack.c.l.b16 %v916
      %v963 = vunpack.c.h.b16 %v916
      %v964 = vunpack.c.l.b16 %v917
      %v965 = vunpack.c.h.b16 %v917
      %v966 = vunpack.c.l.b16 %v918
      %v967 = vunpack.c.h.b16 %v918
      %v968 = vunpack.c.l.b16 %v919
      %v969 = vunpack.c.h.b16 %v919
      %v970 = vunpack.c.l.b16 %v920
      %v971 = vunpack.c.h.b16 %v920
      %v972 = vunpack.c.l.b16 %v921
      %v973 = vunpack.c.h.b16 %v921
      %v974 = vunpack.c.l.b16 %v922
      %v975 = vunpack.c.h.b16 %v922
      %v976 = vunpack.c.l.b16 %v923
      %v977 = vunpack.c.h.b16 %v923
      %v978 = vunpack.c.l.b16 %v924
      %v979 = vunpack.c.h.b16 %v924
      %v980 = vunpack.c.l.b16 %v925
      %v981 = vunpack.c.h.b16 %v925
      %v982 = vunpack.c.l.b16 %v926
      %v983 = vunpack.c.h.b16 %v926
      %v984 = vunpack.c.l.b16 %v927
      %v985 = vunpack.c.h.b16 %v927
      %v986 = vunpack.c.l.b16 %v928
      %v987 = vunpack.c.h.b16 %v928
      %v988 = vunpack.c.l.b16 %v929
      %v989 = vunpack.c.h.b16 %v929
      %v990 = vunpack.c.l.b16 %v930
      %v991 = vunpack.c.h.b16 %v930
      %v992 = vpack.c.b16 %v962, %v960
      %v993 = vpack.c.b16 %v963, %v961
      %v994 = vpack.c.b16 %v966, %v964
      %v995 = vpack.c.b16 %v967, %v965
      %v996 = vpack.c.b16 %v970, %v968
      %v997 = vpack.c.b16 %v971, %v969
      %v998 = vpack.c.b16 %v974, %v972
      %v999 = vpack.c.b16 %v975, %v973
      %v1000 = vpack.c.b16 %v978, %v976
      %v1001 = vpack.c.b16 %v979, %v977
      %v1002 = vpack.c.b16 %v982, %v980
      %v1003 = vpack.c.b16 %v983, %v981
      %v1004 = vpack.c.b16 %v986, %v984
      %v1005 = vpack.c.b16 %v987, %v985
      %v1006 = vpack.c.b16 %v990, %v988
      %v1007 = vpack.c.b16 %v991, %v989
      %1024 = vmatprep.subr.bf16.mxu0 %v993
      %1025 = vmatpush1.bf16.msra.mxu0 %v992
      %1026 = vmatprep.subr.bf16.mxu0 %v995
      %1027 = vmatpush1.bf16.msra.mxu0 %v994
      %1028 = vmatprep.subr.bf16.mxu0 %v997
      %1029 = vmatpush1.bf16.msra.mxu0 %v996
      %1030 = vmatprep.subr.bf16.mxu0 %v999
      %1031 = vmatpush1.bf16.msra.mxu0 %v998
      %1032 = vmatprep.subr.bf16.mxu0 %v1001
      %1033 = vmatpush1.bf16.msra.mxu0 %v1000
      %1034 = vmatprep.subr.bf16.mxu0 %v1003
      %1035 = vmatpush1.bf16.msra.mxu0 %v1002
      %1036 = vmatprep.subr.bf16.mxu0 %v1005
      %1037 = vmatpush1.bf16.msra.mxu0 %v1004
      %1038 = vmatprep.subr.bf16.mxu0 %v1007
      %1039 = vmatpush1.bf16.msra.mxu0 %v1006
      %1040 = vmatprep.subr.bf16.mxu0 0
      %1041 = vmatpush1.bf16.msra.mxu0 0
      %1042 = vmatprep.subr.bf16.mxu0 0
      %1043 = vmatpush1.bf16.msra.mxu0 0
      %1044 = vmatprep.subr.bf16.mxu0 0
      %1045 = vmatpush1.bf16.msra.mxu0 0
      %1046 = vmatprep.subr.bf16.mxu0 0
      %1047 = vmatpush1.bf16.msra.mxu0 0
      %1048 = vmatprep.subr.bf16.mxu0 0
      %1049 = vmatpush1.bf16.msra.mxu0 0
      %1050 = vmatprep.subr.bf16.mxu0 0
      %1051 = vmatpush1.bf16.msra.mxu0 0
      %1052 = vmatprep.subr.bf16.mxu0 0
      %1053 = vmatpush1.bf16.msra.mxu0 0
      %1054 = vmatprep.subr.bf16.mxu0 0
      %1055 = vmatpush1.bf16.msra.mxu0 0
      %1056 = vmatprep.mubr.bf16.mxu0 0
      %1057 = vmatmul.mubr.bf16.gmra.mrb[0].mxu0 %v898
      %v1058 = vpop.f32.mrb[0].mxu0
      %v1059 = vadd.f32 %v937, %v1058
      %v1060 = vpop.f32.mrb[0].mxu0
      %v1061 = vadd.f32 %v941, %v1060
      %v1062 = vpop.f32.mrb[0].mxu0
      %v1063 = vadd.f32 %v937, %v1062
      %v1064 = vpop.f32.mrb[0].mxu0
      %v1065 = vadd.f32 %v941, %v1064
      %1066 = vmatprep.mubr.bf16.mxu0 0
      %1067 = vmatmul.mubr.bf16.gmra.mrb[0].mxu0 %v899
      %v1068 = vpop.f32.mrb[0].mxu0
      %v1069 = vadd.f32 %v937, %v1068
      %v1070 = vpop.f32.mrb[0].mxu0
      %v1071 = vadd.f32 %v941, %v1070
      %v1072 = vpop.f32.mrb[0].mxu0
      %v1073 = vadd.f32 %v937, %v1072
      %v1074 = vpop.f32.mrb[0].mxu0
      %v1075 = vadd.f32 %v941, %v1074
      %1076 = vmatprep.mubr.bf16.mxu0 0
      %1077 = vmatmul.mubr.bf16.gmra.mrb[0].mxu0 %v900
      %v1078 = vpop.f32.mrb[0].mxu0
      %v1079 = vadd.f32 %v937, %v1078
      %v1080 = vpop.f32.mrb[0].mxu0
      %v1081 = vadd.f32 %v941, %v1080
      %v1082 = vpop.f32.mrb[0].mxu0
      %v1083 = vadd.f32 %v937, %v1082
      %v1084 = vpop.f32.mrb[0].mxu0
      %v1085 = vadd.f32 %v941, %v1084
      %1086 = vmatprep.mubr.bf16.mxu0 0
      %1087 = vmatmul.mubr.bf16.gmra.mrb[0].mxu0 %v901
      %v1088 = vpop.f32.mrb[0].mxu0
      %v1089 = vadd.f32 %v937, %v1088
      %v1090 = vpop.f32.mrb[0].mxu0
      %v1091 = vadd.f32 %v941, %v1090
      %v1092 = vpop.f32.mrb[0].mxu0
      %v1093 = vadd.f32 %v937, %v1092
      %v1094 = vpop.f32.mrb[0].mxu0
      %v1095 = vadd.f32 %v941, %v1094
      %1096 = vmatprep.mubr.bf16.mxu0 0
      %1097 = vmatmul.mubr.bf16.gmra.mrb[0].mxu0 %v902
      %v1098 = vpop.f32.mrb[0].mxu0
      %v1099 = vadd.f32 %v937, %v1098
      %v1100 = vpop.f32.mrb[0].mxu0
      %v1101 = vadd.f32 %v941, %v1100
      %v1102 = vpop.f32.mrb[0].mxu0
      %v1103 = vadd.f32 %v937, %v1102
      %v1104 = vpop.f32.mrb[0].mxu0
      %v1105 = vadd.f32 %v941, %v1104
      %1106 = vmatprep.mubr.bf16.mxu0 0
      %1107 = vmatmul.mubr.bf16.gmra.mrb[0].mxu0 %v903
      %v1108 = vpop.f32.mrb[0].mxu0
      %v1109 = vadd.f32 %v937, %v1108
      %v1110 = vpop.f32.mrb[0].mxu0
      %v1111 = vadd.f32 %v941, %v1110
      %v1112 = vpop.f32.mrb[0].mxu0
      %v1113 = vadd.f32 %v937, %v1112
      %v1114 = vpop.f32.mrb[0].mxu0
      %v1115 = vadd.f32 %v941, %v1114
      %1116 = vmatprep.mubr.bf16.mxu0 0
      %1117 = vmatmul.mubr.bf16.gmra.mrb[0].mxu0 %v904
      %v1118 = vpop.f32.mrb[0].mxu0
      %v1119 = vadd.f32 %v937, %v1118
      %v1120 = vpop.f32.mrb[0].mxu0
      %v1121 = vadd.f32 %v941, %v1120
      %v1122 = vpop.f32.mrb[0].mxu0
      %v1123 = vadd.f32 %v937, %v1122
      %v1124 = vpop.f32.mrb[0].mxu0
      %v1125 = vadd.f32 %v941, %v1124
      %1126 = vmatprep.mubr.bf16.mxu0 0
      %1127 = vmatmul.mubr.bf16.gmra.mrb[0].mxu0 %v905
      %v1128 = vpop.f32.mrb[0].mxu0
      %v1129 = vadd.f32 %v937, %v1128
      %v1130 = vpop.f32.mrb[0].mxu0
      %v1131 = vadd.f32 %v941, %v1130
      %v1132 = vpop.f32.mrb[0].mxu0
      %v1133 = vadd.f32 %v937, %v1132
      %v1134 = vpop.f32.mrb[0].mxu0
      %v1135 = vadd.f32 %v941, %v1134
      %1136 = vmatprep.mubr.bf16.mxu0 0
      %1137 = vmatmul.mubr.bf16.gmra.mrb[0].mxu0 %v906
      %v1138 = vpop.f32.mrb[0].mxu0
      %v1139 = vadd.f32 %v937, %v1138
      %v1140 = vpop.f32.mrb[0].mxu0
      %v1141 = vadd.f32 %v941, %v1140
      %v1142 = vpop.f32.mrb[0].mxu0
      %v1143 = vadd.f32 %v937, %v1142
      %v1144 = vpop.f32.mrb[0].mxu0
      %v1145 = vadd.f32 %v941, %v1144
      %1146 = vmatprep.mubr.bf16.mxu0 0
      %1147 = vmatmul.mubr.bf16.gmra.mrb[0].mxu0 %v907
      %v1148 = vpop.f32.mrb[0].mxu0
      %v1149 = vadd.f32 %v937, %v1148
      %v1150 = vpop.f32.mrb[0].mxu0
      %v1151 = vadd.f32 %v941, %v1150
      %v1152 = vpop.f32.mrb[0].mxu0
      %v1153 = vadd.f32 %v937, %v1152
      %v1154 = vpop.f32.mrb[0].mxu0
      %v1155 = vadd.f32 %v941, %v1154
      %1156 = vmatprep.mubr.bf16.mxu0 0
      %1157 = vmatmul.mubr.bf16.gmra.mrb[0].mxu0 %v908
      %v1158 = vpop.f32.mrb[0].mxu0
      %v1159 = vadd.f32 %v937, %v1158
      %v1160 = vpop.f32.mrb[0].mxu0
      %v1161 = vadd.f32 %v941, %v1160
      %v1162 = vpop.f32.mrb[0].mxu0
      %v1163 = vadd.f32 %v937, %v1162
      %v1164 = vpop.f32.mrb[0].mxu0
      %v1165 = vadd.f32 %v941, %v1164
      %1166 = vmatprep.mubr.bf16.mxu0 0
      %1167 = vmatmul.mubr.bf16.gmra.mrb[0].mxu0 %v909
      %v1168 = vpop.f32.mrb[0].mxu0
      %v1169 = vadd.f32 %v937, %v1168
      %v1170 = vpop.f32.mrb[0].mxu0
      %v1171 = vadd.f32 %v941, %v1170
      %v1172 = vpop.f32.mrb[0].mxu0
      %v1173 = vadd.f32 %v937, %v1172
      %v1174 = vpop.f32.mrb[0].mxu0
      %v1175 = vadd.f32 %v941, %v1174
      %1176 = vmatprep.mubr.bf16.mxu0 0
      %1177 = vmatmul.mubr.bf16.gmra.mrb[0].mxu0 %v910
      %v1178 = vpop.f32.mrb[0].mxu0
      %v1179 = vadd.f32 %v937, %v1178
      %v1180 = vpop.f32.mrb[0].mxu0
      %v1181 = vadd.f32 %v941, %v1180
      %v1182 = vpop.f32.mrb[0].mxu0
      %v1183 = vadd.f32 %v937, %v1182
      %v1184 = vpop.f32.mrb[0].mxu0
      %v1185 = vadd.f32 %v941, %v1184
      %1186 = vmatprep.mubr.bf16.mxu0 0
      %1187 = vmatmul.mubr.bf16.gmra.mrb[0].mxu0 %v911
      %v1188 = vpop.f32.mrb[0].mxu0
      %v1189 = vadd.f32 %v937, %v1188
      %v1190 = vpop.f32.mrb[0].mxu0
      %v1191 = vadd.f32 %v941, %v1190
      %v1192 = vpop.f32.mrb[0].mxu0
      %v1193 = vadd.f32 %v937, %v1192
      %v1194 = vpop.f32.mrb[0].mxu0
      %v1195 = vadd.f32 %v941, %v1194
      %1196 = vmatprep.mubr.bf16.mxu0 0
      %1197 = vmatmul.mubr.bf16.gmra.mrb[0].mxu0 %v912
      %v1198 = vpop.f32.mrb[0].mxu0
      %v1199 = vadd.f32 %v937, %v1198
      %v1200 = vpop.f32.mrb[0].mxu0
      %v1201 = vadd.f32 %v941, %v1200
      %v1202 = vpop.f32.mrb[0].mxu0
      %v1203 = vadd.f32 %v937, %v1202
      %v1204 = vpop.f32.mrb[0].mxu0
      %v1205 = vadd.f32 %v941, %v1204
      %1206 = vmatprep.mubr.bf16.mxu0 0
      %1207 = vmatmul.mubr.bf16.gmra.mrb[0].mxu0 %v913
      %v1208 = vpop.f32.mrb[0].mxu0
      %v1209 = vadd.f32 %v937, %v1208
      %v1210 = vpop.f32.mrb[0].mxu0
      %v1211 = vadd.f32 %v941, %v1210
      %v1212 = vpop.f32.mrb[0].mxu0
      %v1213 = vadd.f32 %v937, %v1212
      %v1214 = vpop.f32.mrb[0].mxu0
      %v1215 = vadd.f32 %v941, %v1214
      %1216 = vdwg.mxu0
      %v1217 = vxor.u32 %v1059, 2147483648
      %v1218 = vxor.u32 %v1063, 2147483648
      %v1219 = vxor.u32 %v1069, 2147483648
      %v1220 = vxor.u32 %v1073, 2147483648
      %v1221 = vxor.u32 %v1079, 2147483648
      %v1222 = vxor.u32 %v1083, 2147483648
      %v1223 = vxor.u32 %v1089, 2147483648
      %v1224 = vxor.u32 %v1093, 2147483648
      %v1225 = vxor.u32 %v1099, 2147483648
      %v1226 = vxor.u32 %v1103, 2147483648
      %v1227 = vxor.u32 %v1109, 2147483648
      %v1228 = vxor.u32 %v1113, 2147483648
      %v1229 = vxor.u32 %v1119, 2147483648
      %v1230 = vxor.u32 %v1123, 2147483648
      %v1231 = vxor.u32 %v1129, 2147483648
      %v1232 = vxor.u32 %v1133, 2147483648
      %v1233 = vxor.u32 %v1139, 2147483648
      %v1234 = vxor.u32 %v1143, 2147483648
      %v1235 = vxor.u32 %v1149, 2147483648
      %v1236 = vxor.u32 %v1153, 2147483648
      %v1237 = vxor.u32 %v1159, 2147483648
      %v1238 = vxor.u32 %v1163, 2147483648
      %v1239 = vxor.u32 %v1169, 2147483648
      %v1240 = vxor.u32 %v1173, 2147483648
      %v1241 = vxor.u32 %v1179, 2147483648
      %v1242 = vxor.u32 %v1183, 2147483648
      %v1243 = vxor.u32 %v1189, 2147483648
      %v1244 = vxor.u32 %v1193, 2147483648
      %v1245 = vxor.u32 %v1199, 2147483648
      %v1246 = vxor.u32 %v1203, 2147483648
      %v1247 = vxor.u32 %v1209, 2147483648
      %v1248 = vxor.u32 %v1213, 2147483648
      %v1249 = vmul.f32 %v1217, 1.442695
      %v1250 = vpow.pop %v1249
      %v1251 = vmul.f32 %v1218, 1.442695
      %v1252 = vpow.pop %v1251
      %v1253 = vmul.f32 %v1219, 1.442695
      %v1254 = vpow.pop %v1253
      %v1255 = vmul.f32 %v1220, 1.442695
      %v1256 = vpow.pop %v1255
      %v1257 = vmul.f32 %v1221, 1.442695
      %v1258 = vpow.pop %v1257
      %v1259 = vmul.f32 %v1222, 1.442695
      %v1260 = vpow.pop %v1259
      %v1261 = vmul.f32 %v1223, 1.442695
      %v1262 = vpow.pop %v1261
      %v1263 = vmul.f32 %v1224, 1.442695
      %v1264 = vpow.pop %v1263
      %v1265 = vmul.f32 %v1225, 1.442695
      %v1266 = vpow.pop %v1265
      %v1267 = vmul.f32 %v1226, 1.442695
      %v1268 = vpow.pop %v1267
      %v1269 = vmul.f32 %v1227, 1.442695
      %v1270 = vpow.pop %v1269
      %v1271 = vmul.f32 %v1228, 1.442695
      %v1272 = vpow.pop %v1271
      %v1273 = vmul.f32 %v1229, 1.442695
      %v1274 = vpow.pop %v1273
      %v1275 = vmul.f32 %v1230, 1.442695
      %v1276 = vpow.pop %v1275
      %v1277 = vmul.f32 %v1231, 1.442695
      %v1278 = vpow.pop %v1277
      %v1279 = vmul.f32 %v1232, 1.442695
      %v1280 = vpow.pop %v1279
      %v1281 = vmul.f32 %v1233, 1.442695
      %v1282 = vpow.pop %v1281
      %v1283 = vmul.f32 %v1234, 1.442695
      %v1284 = vpow.pop %v1283
      %v1285 = vmul.f32 %v1235, 1.442695
      %v1286 = vpow.pop %v1285
      %v1287 = vmul.f32 %v1236, 1.442695
      %v1288 = vpow.pop %v1287
      %v1289 = vmul.f32 %v1237, 1.442695
      %v1290 = vpow.pop %v1289
      %v1291 = vmul.f32 %v1238, 1.442695
      %v1292 = vpow.pop %v1291
      %v1293 = vmul.f32 %v1239, 1.442695
      %v1294 = vpow.pop %v1293
      %v1295 = vmul.f32 %v1240, 1.442695
      %v1296 = vpow.pop %v1295
      %v1297 = vmul.f32 %v1241, 1.442695
      %v1298 = vpow.pop %v1297
      %v1299 = vmul.f32 %v1242, 1.442695
      %v1300 = vpow.pop %v1299
      %v1301 = vmul.f32 %v1243, 1.442695
      %v1302 = vpow.pop %v1301
      %v1303 = vmul.f32 %v1244, 1.442695
      %v1304 = vpow.pop %v1303
      %v1305 = vmul.f32 %v1245, 1.442695
      %v1306 = vpow.pop %v1305
      %v1307 = vmul.f32 %v1246, 1.442695
      %v1308 = vpow.pop %v1307
      %v1309 = vmul.f32 %v1247, 1.442695
      %v1310 = vpow.pop %v1309
      %v1311 = vmul.f32 %v1248, 1.442695
      %v1312 = vpow.pop %v1311
      %v1313 = vadd.f32 %v1250, 1.0
      %v1314 = vadd.f32 %v1252, 1.0
      %v1315 = vadd.f32 %v1254, 1.0
      %v1316 = vadd.f32 %v1256, 1.0
      %v1317 = vadd.f32 %v1258, 1.0
      %v1318 = vadd.f32 %v1260, 1.0
      %v1319 = vadd.f32 %v1262, 1.0
      %v1320 = vadd.f32 %v1264, 1.0
      %v1321 = vadd.f32 %v1266, 1.0
      %v1322 = vadd.f32 %v1268, 1.0
      %v1323 = vadd.f32 %v1270, 1.0
      %v1324 = vadd.f32 %v1272, 1.0
      %v1325 = vadd.f32 %v1274, 1.0
      %v1326 = vadd.f32 %v1276, 1.0
      %v1327 = vadd.f32 %v1278, 1.0
      %v1328 = vadd.f32 %v1280, 1.0
      %v1329 = vadd.f32 %v1282, 1.0
      %v1330 = vadd.f32 %v1284, 1.0
      %v1331 = vadd.f32 %v1286, 1.0
      %v1332 = vadd.f32 %v1288, 1.0
      %v1333 = vadd.f32 %v1290, 1.0
      %v1334 = vadd.f32 %v1292, 1.0
      %v1335 = vadd.f32 %v1294, 1.0
      %v1336 = vadd.f32 %v1296, 1.0
      %v1337 = vadd.f32 %v1298, 1.0
      %v1338 = vadd.f32 %v1300, 1.0
      %v1339 = vadd.f32 %v1302, 1.0
      %v1340 = vadd.f32 %v1304, 1.0
      %v1341 = vadd.f32 %v1306, 1.0
      %v1342 = vadd.f32 %v1308, 1.0
      %v1343 = vadd.f32 %v1310, 1.0
      %v1344 = vadd.f32 %v1312, 1.0
      %v1345 = vrcp.pop %v1313
      %v1346 = vmul.f32 1.0, %v1345
      %v1347 = vrcp.pop %v1314
      %v1348 = vmul.f32 1.0, %v1347
      %v1349 = vrcp.pop %v1315
      %v1350 = vmul.f32 1.0, %v1349
      %v1351 = vrcp.pop %v1316
      %v1352 = vmul.f32 1.0, %v1351
      %v1353 = vrcp.pop %v1317
      %v1354 = vmul.f32 1.0, %v1353
      %v1355 = vrcp.pop %v1318
      %v1356 = vmul.f32 1.0, %v1355
      %v1357 = vrcp.pop %v1319
      %v1358 = vmul.f32 1.0, %v1357
      %v1359 = vrcp.pop %v1320
      %v1360 = vmul.f32 1.0, %v1359
      %v1361 = vrcp.pop %v1321
      %v1362 = vmul.f32 1.0, %v1361
      %v1363 = vrcp.pop %v1322
      %v1364 = vmul.f32 1.0, %v1363
      %v1365 = vrcp.pop %v1323
      %v1366 = vmul.f32 1.0, %v1365
      %v1367 = vrcp.pop %v1324
      %v1368 = vmul.f32 1.0, %v1367
      %v1369 = vrcp.pop %v1325
      %v1370 = vmul.f32 1.0, %v1369
      %v1371 = vrcp.pop %v1326
      %v1372 = vmul.f32 1.0, %v1371
      %v1373 = vrcp.pop %v1327
      %v1374 = vmul.f32 1.0, %v1373
      %v1375 = vrcp.pop %v1328
      %v1376 = vmul.f32 1.0, %v1375
      %v1377 = vrcp.pop %v1329
      %v1378 = vmul.f32 1.0, %v1377
      %v1379 = vrcp.pop %v1330
      %v1380 = vmul.f32 1.0, %v1379
      %v1381 = vrcp.pop %v1331
      %v1382 = vmul.f32 1.0, %v1381
      %v1383 = vrcp.pop %v1332
      %v1384 = vmul.f32 1.0, %v1383
      %v1385 = vrcp.pop %v1333
      %v1386 = vmul.f32 1.0, %v1385
      %v1387 = vrcp.pop %v1334
      %v1388 = vmul.f32 1.0, %v1387
      %v1389 = vrcp.pop %v1335
      %v1390 = vmul.f32 1.0, %v1389
      %v1391 = vrcp.pop %v1336
      %v1392 = vmul.f32 1.0, %v1391
      %v1393 = vrcp.pop %v1337
      %v1394 = vmul.f32 1.0, %v1393
      %v1395 = vrcp.pop %v1338
      %v1396 = vmul.f32 1.0, %v1395
      %v1397 = vrcp.pop %v1339
      %v1398 = vmul.f32 1.0, %v1397
      %v1399 = vrcp.pop %v1340
      %v1400 = vmul.f32 1.0, %v1399
      %v1401 = vrcp.pop %v1341
      %v1402 = vmul.f32 1.0, %v1401
      %v1403 = vrcp.pop %v1342
      %v1404 = vmul.f32 1.0, %v1403
      %v1405 = vrcp.pop %v1343
      %v1406 = vmul.f32 1.0, %v1405
      %v1407 = vrcp.pop %v1344
      %v1408 = vmul.f32 1.0, %v1407
      %v1409 = vmax.f32 %v1061, 0.0
      %v1410 = vmax.f32 %v1065, 0.0
      %v1411 = vmax.f32 %v1071, 0.0
      %v1412 = vmax.f32 %v1075, 0.0
      %v1413 = vmax.f32 %v1081, 0.0
      %v1414 = vmax.f32 %v1085, 0.0
      %v1415 = vmax.f32 %v1091, 0.0
      %v1416 = vmax.f32 %v1095, 0.0
      %v1417 = vmax.f32 %v1101, 0.0
      %v1418 = vmax.f32 %v1105, 0.0
      %v1419 = vmax.f32 %v1111, 0.0
      %v1420 = vmax.f32 %v1115, 0.0
      %v1421 = vmax.f32 %v1121, 0.0
      %v1422 = vmax.f32 %v1125, 0.0
      %v1423 = vmax.f32 %v1131, 0.0
      %v1424 = vmax.f32 %v1135, 0.0
      %v1425 = vmax.f32 %v1141, 0.0
      %v1426 = vmax.f32 %v1145, 0.0
      %v1427 = vmax.f32 %v1151, 0.0
      %v1428 = vmax.f32 %v1155, 0.0
      %v1429 = vmax.f32 %v1161, 0.0
      %v1430 = vmax.f32 %v1165, 0.0
      %v1431 = vmax.f32 %v1171, 0.0
      %v1432 = vmax.f32 %v1175, 0.0
      %v1433 = vmax.f32 %v1181, 0.0
      %v1434 = vmax.f32 %v1185, 0.0
      %v1435 = vmax.f32 %v1191, 0.0
      %v1436 = vmax.f32 %v1195, 0.0
      %v1437 = vmax.f32 %v1201, 0.0
      %v1438 = vmax.f32 %v1205, 0.0
      %v1439 = vmax.f32 %v1211, 0.0
      %v1440 = vmax.f32 %v1215, 0.0
      %v1441 = vsub.f32 %v1409, %v866
      %v1442 = vsub.f32 %v1410, %v867
      %v1443 = vsub.f32 %v1411, %v868
      %v1444 = vsub.f32 %v1412, %v869
      %v1445 = vsub.f32 %v1413, %v870
      %v1446 = vsub.f32 %v1414, %v871
      %v1447 = vsub.f32 %v1415, %v872
      %v1448 = vsub.f32 %v1416, %v873
      %v1449 = vsub.f32 %v1417, %v874
      %v1450 = vsub.f32 %v1418, %v875
      %v1451 = vsub.f32 %v1419, %v876
      %v1452 = vsub.f32 %v1420, %v877
      %v1453 = vsub.f32 %v1421, %v878
      %v1454 = vsub.f32 %v1422, %v879
      %v1455 = vsub.f32 %v1423, %v880
      %v1456 = vsub.f32 %v1424, %v881
      %v1457 = vsub.f32 %v1425, %v882
      %v1458 = vsub.f32 %v1426, %v883
      %v1459 = vsub.f32 %v1427, %v884
      %v1460 = vsub.f32 %v1428, %v885
      %v1461 = vsub.f32 %v1429, %v886
      %v1462 = vsub.f32 %v1430, %v887
      %v1463 = vsub.f32 %v1431, %v888
      %v1464 = vsub.f32 %v1432, %v889
      %v1465 = vsub.f32 %v1433, %v890
      %v1466 = vsub.f32 %v1434, %v891
      %v1467 = vsub.f32 %v1435, %v892
      %v1468 = vsub.f32 %v1436, %v893
      %v1469 = vsub.f32 %v1437, %v894
      %v1470 = vsub.f32 %v1438, %v895
      %v1471 = vsub.f32 %v1439, %v896
      %v1472 = vsub.f32 %v1440, %v897
      %v1473 = vmul.f32 %v1346, %v1441
      %v1474 = vmul.f32 %v1348, %v1442
      %v1475 = vmul.f32 %v1350, %v1443
      %v1476 = vmul.f32 %v1352, %v1444
      %v1477 = vmul.f32 %v1354, %v1445
      %v1478 = vmul.f32 %v1356, %v1446
      %v1479 = vmul.f32 %v1358, %v1447
      %v1480 = vmul.f32 %v1360, %v1448
      %v1481 = vmul.f32 %v1362, %v1449
      %v1482 = vmul.f32 %v1364, %v1450
      %v1483 = vmul.f32 %v1366, %v1451
      %v1484 = vmul.f32 %v1368, %v1452
      %v1485 = vmul.f32 %v1370, %v1453
      %v1486 = vmul.f32 %v1372, %v1454
      %v1487 = vmul.f32 %v1374, %v1455
      %v1488 = vmul.f32 %v1376, %v1456
      %v1489 = vmul.f32 %v1378, %v1457
      %v1490 = vmul.f32 %v1380, %v1458
      %v1491 = vmul.f32 %v1382, %v1459
      %v1492 = vmul.f32 %v1384, %v1460
      %v1493 = vmul.f32 %v1386, %v1461
      %v1494 = vmul.f32 %v1388, %v1462
      %v1495 = vmul.f32 %v1390, %v1463
      %v1496 = vmul.f32 %v1392, %v1464
      %v1497 = vmul.f32 %v1394, %v1465
      %v1498 = vmul.f32 %v1396, %v1466
      %v1499 = vmul.f32 %v1398, %v1467
      %v1500 = vmul.f32 %v1400, %v1468
      %v1501 = vmul.f32 %v1402, %v1469
      %v1502 = vmul.f32 %v1404, %v1470
      %v1503 = vmul.f32 %v1406, %v1471
      %v1504 = vmul.f32 %v1408, %v1472
      %v1505 = vadd.f32 %v866, %v1473
      %v1506 = vadd.f32 %v867, %v1474
      %v1507 = vadd.f32 %v868, %v1475
      %v1508 = vadd.f32 %v869, %v1476
      %v1509 = vadd.f32 %v870, %v1477
      %v1510 = vadd.f32 %v871, %v1478
      %v1511 = vadd.f32 %v872, %v1479
      %v1512 = vadd.f32 %v873, %v1480
      %v1513 = vadd.f32 %v874, %v1481
      %v1514 = vadd.f32 %v875, %v1482
      %v1515 = vadd.f32 %v876, %v1483
      %v1516 = vadd.f32 %v877, %v1484
      %v1517 = vadd.f32 %v878, %v1485
      %v1518 = vadd.f32 %v879, %v1486
      %v1519 = vadd.f32 %v880, %v1487
      %v1520 = vadd.f32 %v881, %v1488
      %v1521 = vadd.f32 %v882, %v1489
      %v1522 = vadd.f32 %v883, %v1490
      %v1523 = vadd.f32 %v884, %v1491
      %v1524 = vadd.f32 %v885, %v1492
      %v1525 = vadd.f32 %v886, %v1493
      %v1526 = vadd.f32 %v887, %v1494
      %v1527 = vadd.f32 %v888, %v1495
      %v1528 = vadd.f32 %v889, %v1496
      %v1529 = vadd.f32 %v890, %v1497
      %v1530 = vadd.f32 %v891, %v1498
      %v1531 = vadd.f32 %v892, %v1499
      %v1532 = vadd.f32 %v893, %v1500
      %v1533 = vadd.f32 %v894, %v1501
      %v1534 = vadd.f32 %v895, %v1502
      %v1535 = vadd.f32 %v896, %v1503
      %v1536 = vadd.f32 %v897, %v1504
      %v1537 = vpack.c.bf16 %v1506, %v1505
      %v1538 = vpack.c.bf16 %v1508, %v1507
      %v1539 = vpack.c.bf16 %v1510, %v1509
      %v1540 = vpack.c.bf16 %v1512, %v1511
      %v1541 = vpack.c.bf16 %v1514, %v1513
      %v1542 = vpack.c.bf16 %v1516, %v1515
      %v1543 = vpack.c.bf16 %v1518, %v1517
      %v1544 = vpack.c.bf16 %v1520, %v1519
      %v1545 = vpack.c.bf16 %v1522, %v1521
      %v1546 = vpack.c.bf16 %v1524, %v1523
      %v1547 = vpack.c.bf16 %v1526, %v1525
      %v1548 = vpack.c.bf16 %v1528, %v1527
      %v1549 = vpack.c.bf16 %v1530, %v1529
      %v1550 = vpack.c.bf16 %v1532, %v1531
      %v1551 = vpack.c.bf16 %v1534, %v1533
      %v1552 = vpack.c.bf16 %v1536, %v1535
      %s1553 = scalar_lea.vmem %s1, 256
      %v1554 = vld [vmem:[%s1553] sm:$0xff]
      %v1555 = vld [vmem:[%s1553 + $0x8] sm:$0xff]
      %v1556 = vld [vmem:[%s1553 + $0x10] sm:$0xff]
      %v1557 = vld [vmem:[%s1553 + $0x18] sm:$0xff]
      %v1558 = vld [vmem:[%s1553 + $0x20] sm:$0xff]
      %v1559 = vld [vmem:[%s1553 + $0x28] sm:$0xff]
      %v1560 = vld [vmem:[%s1553 + $0x30] sm:$0xff]
      %v1561 = vld [vmem:[%s1553 + $0x38] sm:$0xff]
      %v1562 = vld [vmem:[%s1553 + $0x40] sm:$0xff]
      %v1563 = vld [vmem:[%s1553 + $0x48] sm:$0xff]
      %v1564 = vld [vmem:[%s1553 + $0x50] sm:$0xff]
      %v1565 = vld [vmem:[%s1553 + $0x58] sm:$0xff]
      %v1566 = vld [vmem:[%s1553 + $0x60] sm:$0xff]
      %v1567 = vld [vmem:[%s1553 + $0x68] sm:$0xff]
      %v1568 = vld [vmem:[%s1553 + $0x70] sm:$0xff]
      %v1569 = vld [vmem:[%s1553 + $0x78] sm:$0xff]
      %s1570 = scalar_lea.vmem %s2, 4
      %v1571 = vld [vmem:[%s1570] sm:$0x3]
      %v1573 = vlaneseq
      %v1574 = vshrl.u32 %v1573, 7
      %v1575 = vsub.s32 0, %v1574
      %v1576 = vrot.slane %v1571, %v1575
      %v1577 = vlaneseq
      %v1578 = vshrl.u32 %v1577, 7
      %v1579 = vsub.s32 1, %v1578
      %v1580 = vrot.slane %v1571, %v1579
      %v1599 = vunpack.c.l.b16 %v1554
      %v1600 = vunpack.c.h.b16 %v1554
      %v1601 = vunpack.c.l.b16 %v1555
      %v1602 = vunpack.c.h.b16 %v1555
      %v1603 = vunpack.c.l.b16 %v1556
      %v1604 = vunpack.c.h.b16 %v1556
      %v1605 = vunpack.c.l.b16 %v1557
      %v1606 = vunpack.c.h.b16 %v1557
      %v1607 = vunpack.c.l.b16 %v1558
      %v1608 = vunpack.c.h.b16 %v1558
      %v1609 = vunpack.c.l.b16 %v1559
      %v1610 = vunpack.c.h.b16 %v1559
      %v1611 = vunpack.c.l.b16 %v1560
      %v1612 = vunpack.c.h.b16 %v1560
      %v1613 = vunpack.c.l.b16 %v1561
      %v1614 = vunpack.c.h.b16 %v1561
      %v1615 = vunpack.c.l.b16 %v1562
      %v1616 = vunpack.c.h.b16 %v1562
      %v1617 = vunpack.c.l.b16 %v1563
      %v1618 = vunpack.c.h.b16 %v1563
      %v1619 = vunpack.c.l.b16 %v1564
      %v1620 = vunpack.c.h.b16 %v1564
      %v1621 = vunpack.c.l.b16 %v1565
      %v1622 = vunpack.c.h.b16 %v1565
      %v1623 = vunpack.c.l.b16 %v1566
      %v1624 = vunpack.c.h.b16 %v1566
      %v1625 = vunpack.c.l.b16 %v1567
      %v1626 = vunpack.c.h.b16 %v1567
      %v1627 = vunpack.c.l.b16 %v1568
      %v1628 = vunpack.c.h.b16 %v1568
      %v1629 = vunpack.c.l.b16 %v1569
      %v1630 = vunpack.c.h.b16 %v1569
      %v1631 = vpack.c.b16 %v1601, %v1599
      %v1632 = vpack.c.b16 %v1602, %v1600
      %v1633 = vpack.c.b16 %v1605, %v1603
      %v1634 = vpack.c.b16 %v1606, %v1604
      %v1635 = vpack.c.b16 %v1609, %v1607
      %v1636 = vpack.c.b16 %v1610, %v1608
      %v1637 = vpack.c.b16 %v1613, %v1611
      %v1638 = vpack.c.b16 %v1614, %v1612
      %v1639 = vpack.c.b16 %v1617, %v1615
      %v1640 = vpack.c.b16 %v1618, %v1616
      %v1641 = vpack.c.b16 %v1621, %v1619
      %v1642 = vpack.c.b16 %v1622, %v1620
      %v1643 = vpack.c.b16 %v1625, %v1623
      %v1644 = vpack.c.b16 %v1626, %v1624
      %v1645 = vpack.c.b16 %v1629, %v1627
      %v1646 = vpack.c.b16 %v1630, %v1628
      %1663 = vmatprep.subr.bf16.mxu0 %v1632
      %1664 = vmatpush1.bf16.msra.mxu0 %v1631
      %1665 = vmatprep.subr.bf16.mxu0 %v1634
      %1666 = vmatpush1.bf16.msra.mxu0 %v1633
      %1667 = vmatprep.subr.bf16.mxu0 %v1636
      %1668 = vmatpush1.bf16.msra.mxu0 %v1635
      %1669 = vmatprep.subr.bf16.mxu0 %v1638
      %1670 = vmatpush1.bf16.msra.mxu0 %v1637
      %1671 = vmatprep.subr.bf16.mxu0 %v1640
      %1672 = vmatpush1.bf16.msra.mxu0 %v1639
      %1673 = vmatprep.subr.bf16.mxu0 %v1642
      %1674 = vmatpush1.bf16.msra.mxu0 %v1641
      %1675 = vmatprep.subr.bf16.mxu0 %v1644
      %1676 = vmatpush1.bf16.msra.mxu0 %v1643
      %1677 = vmatprep.subr.bf16.mxu0 %v1646
      %1678 = vmatpush1.bf16.msra.mxu0 %v1645
      %1679 = vmatprep.subr.bf16.mxu0 0
      %1680 = vmatpush1.bf16.msra.mxu0 0
      %1681 = vmatprep.subr.bf16.mxu0 0
      %1682 = vmatpush1.bf16.msra.mxu0 0
      %1683 = vmatprep.subr.bf16.mxu0 0
      %1684 = vmatpush1.bf16.msra.mxu0 0
      %1685 = vmatprep.subr.bf16.mxu0 0
      %1686 = vmatpush1.bf16.msra.mxu0 0
      %1687 = vmatprep.subr.bf16.mxu0 0
      %1688 = vmatpush1.bf16.msra.mxu0 0
      %1689 = vmatprep.subr.bf16.mxu0 0
      %1690 = vmatpush1.bf16.msra.mxu0 0
      %1691 = vmatprep.subr.bf16.mxu0 0
      %1692 = vmatpush1.bf16.msra.mxu0 0
      %1693 = vmatprep.subr.bf16.mxu0 0
      %1694 = vmatpush1.bf16.msra.mxu0 0
      %1695 = vmatprep.mubr.bf16.mxu0 0
      %1696 = vmatmul.mubr.bf16.gmra.mrb[0].mxu0 %v1537
      %v1697 = vpop.f32.mrb[0].mxu0
      %v1698 = vadd.f32 %v1576, %v1697
      %v1699 = vpop.f32.mrb[0].mxu0
      %v1700 = vadd.f32 %v1580, %v1699
      %v1701 = vpop.f32.mrb[0].mxu0
      %v1702 = vadd.f32 %v1576, %v1701
      %v1703 = vpop.f32.mrb[0].mxu0
      %v1704 = vadd.f32 %v1580, %v1703
      %1705 = vmatprep.mubr.bf16.mxu0 0
      %1706 = vmatmul.mubr.bf16.gmra.mrb[0].mxu0 %v1538
      %v1707 = vpop.f32.mrb[0].mxu0
      %v1708 = vadd.f32 %v1576, %v1707
      %v1709 = vpop.f32.mrb[0].mxu0
      %v1710 = vadd.f32 %v1580, %v1709
      %v1711 = vpop.f32.mrb[0].mxu0
      %v1712 = vadd.f32 %v1576, %v1711
      %v1713 = vpop.f32.mrb[0].mxu0
      %v1714 = vadd.f32 %v1580, %v1713
      %1715 = vmatprep.mubr.bf16.mxu0 0
      %1716 = vmatmul.mubr.bf16.gmra.mrb[0].mxu0 %v1539
      %v1717 = vpop.f32.mrb[0].mxu0
      %v1718 = vadd.f32 %v1576, %v1717
      %v1719 = vpop.f32.mrb[0].mxu0
      %v1720 = vadd.f32 %v1580, %v1719
      %v1721 = vpop.f32.mrb[0].mxu0
      %v1722 = vadd.f32 %v1576, %v1721
      %v1723 = vpop.f32.mrb[0].mxu0
      %v1724 = vadd.f32 %v1580, %v1723
      %1725 = vmatprep.mubr.bf16.mxu0 0
      %1726 = vmatmul.mubr.bf16.gmra.mrb[0].mxu0 %v1540
      %v1727 = vpop.f32.mrb[0].mxu0
      %v1728 = vadd.f32 %v1576, %v1727
      %v1729 = vpop.f32.mrb[0].mxu0
      %v1730 = vadd.f32 %v1580, %v1729
      %v1731 = vpop.f32.mrb[0].mxu0
      %v1732 = vadd.f32 %v1576, %v1731
      %v1733 = vpop.f32.mrb[0].mxu0
      %v1734 = vadd.f32 %v1580, %v1733
      %1735 = vmatprep.mubr.bf16.mxu0 0
      %1736 = vmatmul.mubr.bf16.gmra.mrb[0].mxu0 %v1541
      %v1737 = vpop.f32.mrb[0].mxu0
      %v1738 = vadd.f32 %v1576, %v1737
      %v1739 = vpop.f32.mrb[0].mxu0
      %v1740 = vadd.f32 %v1580, %v1739
      %v1741 = vpop.f32.mrb[0].mxu0
      %v1742 = vadd.f32 %v1576, %v1741
      %v1743 = vpop.f32.mrb[0].mxu0
      %v1744 = vadd.f32 %v1580, %v1743
      %1745 = vmatprep.mubr.bf16.mxu0 0
      %1746 = vmatmul.mubr.bf16.gmra.mrb[0].mxu0 %v1542
      %v1747 = vpop.f32.mrb[0].mxu0
      %v1748 = vadd.f32 %v1576, %v1747
      %v1749 = vpop.f32.mrb[0].mxu0
      %v1750 = vadd.f32 %v1580, %v1749
      %v1751 = vpop.f32.mrb[0].mxu0
      %v1752 = vadd.f32 %v1576, %v1751
      %v1753 = vpop.f32.mrb[0].mxu0
      %v1754 = vadd.f32 %v1580, %v1753
      %1755 = vmatprep.mubr.bf16.mxu0 0
      %1756 = vmatmul.mubr.bf16.gmra.mrb[0].mxu0 %v1543
      %v1757 = vpop.f32.mrb[0].mxu0
      %v1758 = vadd.f32 %v1576, %v1757
      %v1759 = vpop.f32.mrb[0].mxu0
      %v1760 = vadd.f32 %v1580, %v1759
      %v1761 = vpop.f32.mrb[0].mxu0
      %v1762 = vadd.f32 %v1576, %v1761
      %v1763 = vpop.f32.mrb[0].mxu0
      %v1764 = vadd.f32 %v1580, %v1763
      %1765 = vmatprep.mubr.bf16.mxu0 0
      %1766 = vmatmul.mubr.bf16.gmra.mrb[0].mxu0 %v1544
      %v1767 = vpop.f32.mrb[0].mxu0
      %v1768 = vadd.f32 %v1576, %v1767
      %v1769 = vpop.f32.mrb[0].mxu0
      %v1770 = vadd.f32 %v1580, %v1769
      %v1771 = vpop.f32.mrb[0].mxu0
      %v1772 = vadd.f32 %v1576, %v1771
      %v1773 = vpop.f32.mrb[0].mxu0
      %v1774 = vadd.f32 %v1580, %v1773
      %1775 = vmatprep.mubr.bf16.mxu0 0
      %1776 = vmatmul.mubr.bf16.gmra.mrb[0].mxu0 %v1545
      %v1777 = vpop.f32.mrb[0].mxu0
      %v1778 = vadd.f32 %v1576, %v1777
      %v1779 = vpop.f32.mrb[0].mxu0
      %v1780 = vadd.f32 %v1580, %v1779
      %v1781 = vpop.f32.mrb[0].mxu0
      %v1782 = vadd.f32 %v1576, %v1781
      %v1783 = vpop.f32.mrb[0].mxu0
      %v1784 = vadd.f32 %v1580, %v1783
      %1785 = vmatprep.mubr.bf16.mxu0 0
      %1786 = vmatmul.mubr.bf16.gmra.mrb[0].mxu0 %v1546
      %v1787 = vpop.f32.mrb[0].mxu0
      %v1788 = vadd.f32 %v1576, %v1787
      %v1789 = vpop.f32.mrb[0].mxu0
      %v1790 = vadd.f32 %v1580, %v1789
      %v1791 = vpop.f32.mrb[0].mxu0
      %v1792 = vadd.f32 %v1576, %v1791
      %v1793 = vpop.f32.mrb[0].mxu0
      %v1794 = vadd.f32 %v1580, %v1793
      %1795 = vmatprep.mubr.bf16.mxu0 0
      %1796 = vmatmul.mubr.bf16.gmra.mrb[0].mxu0 %v1547
      %v1797 = vpop.f32.mrb[0].mxu0
      %v1798 = vadd.f32 %v1576, %v1797
      %v1799 = vpop.f32.mrb[0].mxu0
      %v1800 = vadd.f32 %v1580, %v1799
      %v1801 = vpop.f32.mrb[0].mxu0
      %v1802 = vadd.f32 %v1576, %v1801
      %v1803 = vpop.f32.mrb[0].mxu0
      %v1804 = vadd.f32 %v1580, %v1803
      %1805 = vmatprep.mubr.bf16.mxu0 0
      %1806 = vmatmul.mubr.bf16.gmra.mrb[0].mxu0 %v1548
      %v1807 = vpop.f32.mrb[0].mxu0
      %v1808 = vadd.f32 %v1576, %v1807
      %v1809 = vpop.f32.mrb[0].mxu0
      %v1810 = vadd.f32 %v1580, %v1809
      %v1811 = vpop.f32.mrb[0].mxu0
      %v1812 = vadd.f32 %v1576, %v1811
      %v1813 = vpop.f32.mrb[0].mxu0
      %v1814 = vadd.f32 %v1580, %v1813
      %1815 = vmatprep.mubr.bf16.mxu0 0
      %1816 = vmatmul.mubr.bf16.gmra.mrb[0].mxu0 %v1549
      %v1817 = vpop.f32.mrb[0].mxu0
      %v1818 = vadd.f32 %v1576, %v1817
      %v1819 = vpop.f32.mrb[0].mxu0
      %v1820 = vadd.f32 %v1580, %v1819
      %v1821 = vpop.f32.mrb[0].mxu0
      %v1822 = vadd.f32 %v1576, %v1821
      %v1823 = vpop.f32.mrb[0].mxu0
      %v1824 = vadd.f32 %v1580, %v1823
      %1825 = vmatprep.mubr.bf16.mxu0 0
      %1826 = vmatmul.mubr.bf16.gmra.mrb[0].mxu0 %v1550
      %v1827 = vpop.f32.mrb[0].mxu0
      %v1828 = vadd.f32 %v1576, %v1827
      %v1829 = vpop.f32.mrb[0].mxu0
      %v1830 = vadd.f32 %v1580, %v1829
      %v1831 = vpop.f32.mrb[0].mxu0
      %v1832 = vadd.f32 %v1576, %v1831
      %v1833 = vpop.f32.mrb[0].mxu0
      %v1834 = vadd.f32 %v1580, %v1833
      %1835 = vmatprep.mubr.bf16.mxu0 0
      %1836 = vmatmul.mubr.bf16.gmra.mrb[0].mxu0 %v1551
      %v1837 = vpop.f32.mrb[0].mxu0
      %v1838 = vadd.f32 %v1576, %v1837
      %v1839 = vpop.f32.mrb[0].mxu0
      %v1840 = vadd.f32 %v1580, %v1839
      %v1841 = vpop.f32.mrb[0].mxu0
      %v1842 = vadd.f32 %v1576, %v1841
      %v1843 = vpop.f32.mrb[0].mxu0
      %v1844 = vadd.f32 %v1580, %v1843
      %1845 = vmatprep.mubr.bf16.mxu0 0
      %1846 = vmatmul.mubr.bf16.gmra.mrb[0].mxu0 %v1552
      %v1847 = vpop.f32.mrb[0].mxu0
      %v1848 = vadd.f32 %v1576, %v1847
      %v1849 = vpop.f32.mrb[0].mxu0
      %v1850 = vadd.f32 %v1580, %v1849
      %v1851 = vpop.f32.mrb[0].mxu0
      %v1852 = vadd.f32 %v1576, %v1851
      %v1853 = vpop.f32.mrb[0].mxu0
      %v1854 = vadd.f32 %v1580, %v1853
      %1855 = vdwg.mxu0
      %v1856 = vxor.u32 %v1698, 2147483648
      %v1857 = vxor.u32 %v1702, 2147483648
      %v1858 = vxor.u32 %v1708, 2147483648
      %v1859 = vxor.u32 %v1712, 2147483648
      %v1860 = vxor.u32 %v1718, 2147483648
      %v1861 = vxor.u32 %v1722, 2147483648
      %v1862 = vxor.u32 %v1728, 2147483648
      %v1863 = vxor.u32 %v1732, 2147483648
      %v1864 = vxor.u32 %v1738, 2147483648
      %v1865 = vxor.u32 %v1742, 2147483648
      %v1866 = vxor.u32 %v1748, 2147483648
      %v1867 = vxor.u32 %v1752, 2147483648
      %v1868 = vxor.u32 %v1758, 2147483648
      %v1869 = vxor.u32 %v1762, 2147483648
      %v1870 = vxor.u32 %v1768, 2147483648
      %v1871 = vxor.u32 %v1772, 2147483648
      %v1872 = vxor.u32 %v1778, 2147483648
      %v1873 = vxor.u32 %v1782, 2147483648
      %v1874 = vxor.u32 %v1788, 2147483648
      %v1875 = vxor.u32 %v1792, 2147483648
      %v1876 = vxor.u32 %v1798, 2147483648
      %v1877 = vxor.u32 %v1802, 2147483648
      %v1878 = vxor.u32 %v1808, 2147483648
      %v1879 = vxor.u32 %v1812, 2147483648
      %v1880 = vxor.u32 %v1818, 2147483648
      %v1881 = vxor.u32 %v1822, 2147483648
      %v1882 = vxor.u32 %v1828, 2147483648
      %v1883 = vxor.u32 %v1832, 2147483648
      %v1884 = vxor.u32 %v1838, 2147483648
      %v1885 = vxor.u32 %v1842, 2147483648
      %v1886 = vxor.u32 %v1848, 2147483648
      %v1887 = vxor.u32 %v1852, 2147483648
      %v1888 = vmul.f32 %v1856, 1.442695
      %v1889 = vpow.pop %v1888
      %v1890 = vmul.f32 %v1857, 1.442695
      %v1891 = vpow.pop %v1890
      %v1892 = vmul.f32 %v1858, 1.442695
      %v1893 = vpow.pop %v1892
      %v1894 = vmul.f32 %v1859, 1.442695
      %v1895 = vpow.pop %v1894
      %v1896 = vmul.f32 %v1860, 1.442695
      %v1897 = vpow.pop %v1896
      %v1898 = vmul.f32 %v1861, 1.442695
      %v1899 = vpow.pop %v1898
      %v1900 = vmul.f32 %v1862, 1.442695
      %v1901 = vpow.pop %v1900
      %v1902 = vmul.f32 %v1863, 1.442695
      %v1903 = vpow.pop %v1902
      %v1904 = vmul.f32 %v1864, 1.442695
      %v1905 = vpow.pop %v1904
      %v1906 = vmul.f32 %v1865, 1.442695
      %v1907 = vpow.pop %v1906
      %v1908 = vmul.f32 %v1866, 1.442695
      %v1909 = vpow.pop %v1908
      %v1910 = vmul.f32 %v1867, 1.442695
      %v1911 = vpow.pop %v1910
      %v1912 = vmul.f32 %v1868, 1.442695
      %v1913 = vpow.pop %v1912
      %v1914 = vmul.f32 %v1869, 1.442695
      %v1915 = vpow.pop %v1914
      %v1916 = vmul.f32 %v1870, 1.442695
      %v1917 = vpow.pop %v1916
      %v1918 = vmul.f32 %v1871, 1.442695
      %v1919 = vpow.pop %v1918
      %v1920 = vmul.f32 %v1872, 1.442695
      %v1921 = vpow.pop %v1920
      %v1922 = vmul.f32 %v1873, 1.442695
      %v1923 = vpow.pop %v1922
      %v1924 = vmul.f32 %v1874, 1.442695
      %v1925 = vpow.pop %v1924
      %v1926 = vmul.f32 %v1875, 1.442695
      %v1927 = vpow.pop %v1926
      %v1928 = vmul.f32 %v1876, 1.442695
      %v1929 = vpow.pop %v1928
      %v1930 = vmul.f32 %v1877, 1.442695
      %v1931 = vpow.pop %v1930
      %v1932 = vmul.f32 %v1878, 1.442695
      %v1933 = vpow.pop %v1932
      %v1934 = vmul.f32 %v1879, 1.442695
      %v1935 = vpow.pop %v1934
      %v1936 = vmul.f32 %v1880, 1.442695
      %v1937 = vpow.pop %v1936
      %v1938 = vmul.f32 %v1881, 1.442695
      %v1939 = vpow.pop %v1938
      %v1940 = vmul.f32 %v1882, 1.442695
      %v1941 = vpow.pop %v1940
      %v1942 = vmul.f32 %v1883, 1.442695
      %v1943 = vpow.pop %v1942
      %v1944 = vmul.f32 %v1884, 1.442695
      %v1945 = vpow.pop %v1944
      %v1946 = vmul.f32 %v1885, 1.442695
      %v1947 = vpow.pop %v1946
      %v1948 = vmul.f32 %v1886, 1.442695
      %v1949 = vpow.pop %v1948
      %v1950 = vmul.f32 %v1887, 1.442695
      %v1951 = vpow.pop %v1950
      %v1952 = vadd.f32 %v1889, 1.0
      %v1953 = vadd.f32 %v1891, 1.0
      %v1954 = vadd.f32 %v1893, 1.0
      %v1955 = vadd.f32 %v1895, 1.0
      %v1956 = vadd.f32 %v1897, 1.0
      %v1957 = vadd.f32 %v1899, 1.0
      %v1958 = vadd.f32 %v1901, 1.0
      %v1959 = vadd.f32 %v1903, 1.0
      %v1960 = vadd.f32 %v1905, 1.0
      %v1961 = vadd.f32 %v1907, 1.0
      %v1962 = vadd.f32 %v1909, 1.0
      %v1963 = vadd.f32 %v1911, 1.0
      %v1964 = vadd.f32 %v1913, 1.0
      %v1965 = vadd.f32 %v1915, 1.0
      %v1966 = vadd.f32 %v1917, 1.0
      %v1967 = vadd.f32 %v1919, 1.0
      %v1968 = vadd.f32 %v1921, 1.0
      %v1969 = vadd.f32 %v1923, 1.0
      %v1970 = vadd.f32 %v1925, 1.0
      %v1971 = vadd.f32 %v1927, 1.0
      %v1972 = vadd.f32 %v1929, 1.0
      %v1973 = vadd.f32 %v1931, 1.0
      %v1974 = vadd.f32 %v1933, 1.0
      %v1975 = vadd.f32 %v1935, 1.0
      %v1976 = vadd.f32 %v1937, 1.0
      %v1977 = vadd.f32 %v1939, 1.0
      %v1978 = vadd.f32 %v1941, 1.0
      %v1979 = vadd.f32 %v1943, 1.0
      %v1980 = vadd.f32 %v1945, 1.0
      %v1981 = vadd.f32 %v1947, 1.0
      %v1982 = vadd.f32 %v1949, 1.0
      %v1983 = vadd.f32 %v1951, 1.0
      %v1984 = vrcp.pop %v1952
      %v1985 = vmul.f32 1.0, %v1984
      %v1986 = vrcp.pop %v1953
      %v1987 = vmul.f32 1.0, %v1986
      %v1988 = vrcp.pop %v1954
      %v1989 = vmul.f32 1.0, %v1988
      %v1990 = vrcp.pop %v1955
      %v1991 = vmul.f32 1.0, %v1990
      %v1992 = vrcp.pop %v1956
      %v1993 = vmul.f32 1.0, %v1992
      %v1994 = vrcp.pop %v1957
      %v1995 = vmul.f32 1.0, %v1994
      %v1996 = vrcp.pop %v1958
      %v1997 = vmul.f32 1.0, %v1996
      %v1998 = vrcp.pop %v1959
      %v1999 = vmul.f32 1.0, %v1998
      %v2000 = vrcp.pop %v1960
      %v2001 = vmul.f32 1.0, %v2000
      %v2002 = vrcp.pop %v1961
      %v2003 = vmul.f32 1.0, %v2002
      %v2004 = vrcp.pop %v1962
      %v2005 = vmul.f32 1.0, %v2004
      %v2006 = vrcp.pop %v1963
      %v2007 = vmul.f32 1.0, %v2006
      %v2008 = vrcp.pop %v1964
      %v2009 = vmul.f32 1.0, %v2008
      %v2010 = vrcp.pop %v1965
      %v2011 = vmul.f32 1.0, %v2010
      %v2012 = vrcp.pop %v1966
      %v2013 = vmul.f32 1.0, %v2012
      %v2014 = vrcp.pop %v1967
      %v2015 = vmul.f32 1.0, %v2014
      %v2016 = vrcp.pop %v1968
      %v2017 = vmul.f32 1.0, %v2016
      %v2018 = vrcp.pop %v1969
      %v2019 = vmul.f32 1.0, %v2018
      %v2020 = vrcp.pop %v1970
      %v2021 = vmul.f32 1.0, %v2020
      %v2022 = vrcp.pop %v1971
      %v2023 = vmul.f32 1.0, %v2022
      %v2024 = vrcp.pop %v1972
      %v2025 = vmul.f32 1.0, %v2024
      %v2026 = vrcp.pop %v1973
      %v2027 = vmul.f32 1.0, %v2026
      %v2028 = vrcp.pop %v1974
      %v2029 = vmul.f32 1.0, %v2028
      %v2030 = vrcp.pop %v1975
      %v2031 = vmul.f32 1.0, %v2030
      %v2032 = vrcp.pop %v1976
      %v2033 = vmul.f32 1.0, %v2032
      %v2034 = vrcp.pop %v1977
      %v2035 = vmul.f32 1.0, %v2034
      %v2036 = vrcp.pop %v1978
      %v2037 = vmul.f32 1.0, %v2036
      %v2038 = vrcp.pop %v1979
      %v2039 = vmul.f32 1.0, %v2038
      %v2040 = vrcp.pop %v1980
      %v2041 = vmul.f32 1.0, %v2040
      %v2042 = vrcp.pop %v1981
      %v2043 = vmul.f32 1.0, %v2042
      %v2044 = vrcp.pop %v1982
      %v2045 = vmul.f32 1.0, %v2044
      %v2046 = vrcp.pop %v1983
      %v2047 = vmul.f32 1.0, %v2046
      %v2048 = vmax.f32 %v1700, 0.0
      %v2049 = vmax.f32 %v1704, 0.0
      %v2050 = vmax.f32 %v1710, 0.0
      %v2051 = vmax.f32 %v1714, 0.0
      %v2052 = vmax.f32 %v1720, 0.0
      %v2053 = vmax.f32 %v1724, 0.0
      %v2054 = vmax.f32 %v1730, 0.0
      %v2055 = vmax.f32 %v1734, 0.0
      %v2056 = vmax.f32 %v1740, 0.0
      %v2057 = vmax.f32 %v1744, 0.0
      %v2058 = vmax.f32 %v1750, 0.0
      %v2059 = vmax.f32 %v1754, 0.0
      %v2060 = vmax.f32 %v1760, 0.0
      %v2061 = vmax.f32 %v1764, 0.0
      %v2062 = vmax.f32 %v1770, 0.0
      %v2063 = vmax.f32 %v1774, 0.0
      %v2064 = vmax.f32 %v1780, 0.0
      %v2065 = vmax.f32 %v1784, 0.0
      %v2066 = vmax.f32 %v1790, 0.0
      %v2067 = vmax.f32 %v1794, 0.0
      %v2068 = vmax.f32 %v1800, 0.0
      %v2069 = vmax.f32 %v1804, 0.0
      %v2070 = vmax.f32 %v1810, 0.0
      %v2071 = vmax.f32 %v1814, 0.0
      %v2072 = vmax.f32 %v1820, 0.0
      %v2073 = vmax.f32 %v1824, 0.0
      %v2074 = vmax.f32 %v1830, 0.0
      %v2075 = vmax.f32 %v1834, 0.0
      %v2076 = vmax.f32 %v1840, 0.0
      %v2077 = vmax.f32 %v1844, 0.0
      %v2078 = vmax.f32 %v1850, 0.0
      %v2079 = vmax.f32 %v1854, 0.0
      %v2080 = vsub.f32 %v2048, %v1505
      %v2081 = vsub.f32 %v2049, %v1506
      %v2082 = vsub.f32 %v2050, %v1507
      %v2083 = vsub.f32 %v2051, %v1508
      %v2084 = vsub.f32 %v2052, %v1509
      %v2085 = vsub.f32 %v2053, %v1510
      %v2086 = vsub.f32 %v2054, %v1511
      %v2087 = vsub.f32 %v2055, %v1512
      %v2088 = vsub.f32 %v2056, %v1513
      %v2089 = vsub.f32 %v2057, %v1514
      %v2090 = vsub.f32 %v2058, %v1515
      %v2091 = vsub.f32 %v2059, %v1516
      %v2092 = vsub.f32 %v2060, %v1517
      %v2093 = vsub.f32 %v2061, %v1518
      %v2094 = vsub.f32 %v2062, %v1519
      %v2095 = vsub.f32 %v2063, %v1520
      %v2096 = vsub.f32 %v2064, %v1521
      %v2097 = vsub.f32 %v2065, %v1522
      %v2098 = vsub.f32 %v2066, %v1523
      %v2099 = vsub.f32 %v2067, %v1524
      %v2100 = vsub.f32 %v2068, %v1525
      %v2101 = vsub.f32 %v2069, %v1526
      %v2102 = vsub.f32 %v2070, %v1527
      %v2103 = vsub.f32 %v2071, %v1528
      %v2104 = vsub.f32 %v2072, %v1529
      %v2105 = vsub.f32 %v2073, %v1530
      %v2106 = vsub.f32 %v2074, %v1531
      %v2107 = vsub.f32 %v2075, %v1532
      %v2108 = vsub.f32 %v2076, %v1533
      %v2109 = vsub.f32 %v2077, %v1534
      %v2110 = vsub.f32 %v2078, %v1535
      %v2111 = vsub.f32 %v2079, %v1536
      %v2112 = vmul.f32 %v1985, %v2080
      %v2113 = vmul.f32 %v1987, %v2081
      %v2114 = vmul.f32 %v1989, %v2082
      %v2115 = vmul.f32 %v1991, %v2083
      %v2116 = vmul.f32 %v1993, %v2084
      %v2117 = vmul.f32 %v1995, %v2085
      %v2118 = vmul.f32 %v1997, %v2086
      %v2119 = vmul.f32 %v1999, %v2087
      %v2120 = vmul.f32 %v2001, %v2088
      %v2121 = vmul.f32 %v2003, %v2089
      %v2122 = vmul.f32 %v2005, %v2090
      %v2123 = vmul.f32 %v2007, %v2091
      %v2124 = vmul.f32 %v2009, %v2092
      %v2125 = vmul.f32 %v2011, %v2093
      %v2126 = vmul.f32 %v2013, %v2094
      %v2127 = vmul.f32 %v2015, %v2095
      %v2128 = vmul.f32 %v2017, %v2096
      %v2129 = vmul.f32 %v2019, %v2097
      %v2130 = vmul.f32 %v2021, %v2098
      %v2131 = vmul.f32 %v2023, %v2099
      %v2132 = vmul.f32 %v2025, %v2100
      %v2133 = vmul.f32 %v2027, %v2101
      %v2134 = vmul.f32 %v2029, %v2102
      %v2135 = vmul.f32 %v2031, %v2103
      %v2136 = vmul.f32 %v2033, %v2104
      %v2137 = vmul.f32 %v2035, %v2105
      %v2138 = vmul.f32 %v2037, %v2106
      %v2139 = vmul.f32 %v2039, %v2107
      %v2140 = vmul.f32 %v2041, %v2108
      %v2141 = vmul.f32 %v2043, %v2109
      %v2142 = vmul.f32 %v2045, %v2110
      %v2143 = vmul.f32 %v2047, %v2111
      %v2144 = vadd.f32 %v1505, %v2112
      %v2145 = vadd.f32 %v1506, %v2113
      %v2146 = vadd.f32 %v1507, %v2114
      %v2147 = vadd.f32 %v1508, %v2115
      %v2148 = vadd.f32 %v1509, %v2116
      %v2149 = vadd.f32 %v1510, %v2117
      %v2150 = vadd.f32 %v1511, %v2118
      %v2151 = vadd.f32 %v1512, %v2119
      %v2152 = vadd.f32 %v1513, %v2120
      %v2153 = vadd.f32 %v1514, %v2121
      %v2154 = vadd.f32 %v1515, %v2122
      %v2155 = vadd.f32 %v1516, %v2123
      %v2156 = vadd.f32 %v1517, %v2124
      %v2157 = vadd.f32 %v1518, %v2125
      %v2158 = vadd.f32 %v1519, %v2126
      %v2159 = vadd.f32 %v1520, %v2127
      %v2160 = vadd.f32 %v1521, %v2128
      %v2161 = vadd.f32 %v1522, %v2129
      %v2162 = vadd.f32 %v1523, %v2130
      %v2163 = vadd.f32 %v1524, %v2131
      %v2164 = vadd.f32 %v1525, %v2132
      %v2165 = vadd.f32 %v1526, %v2133
      %v2166 = vadd.f32 %v1527, %v2134
      %v2167 = vadd.f32 %v1528, %v2135
      %v2168 = vadd.f32 %v1529, %v2136
      %v2169 = vadd.f32 %v1530, %v2137
      %v2170 = vadd.f32 %v1531, %v2138
      %v2171 = vadd.f32 %v1532, %v2139
      %v2172 = vadd.f32 %v1533, %v2140
      %v2173 = vadd.f32 %v1534, %v2141
      %v2174 = vadd.f32 %v1535, %v2142
      %v2175 = vadd.f32 %v1536, %v2143
      %v2176 = vld [vmem:[%s3] sm:$0x1]
      %v2177 = vpack.c.bf16 %v2145, %v2144
      %v2178 = vpack.c.bf16 %v2147, %v2146
      %v2179 = vpack.c.bf16 %v2149, %v2148
      %v2180 = vpack.c.bf16 %v2151, %v2150
      %v2181 = vpack.c.bf16 %v2153, %v2152
      %v2182 = vpack.c.bf16 %v2155, %v2154
      %v2183 = vpack.c.bf16 %v2157, %v2156
      %v2184 = vpack.c.bf16 %v2159, %v2158
      %v2185 = vpack.c.bf16 %v2161, %v2160
      %v2186 = vpack.c.bf16 %v2163, %v2162
      %v2187 = vpack.c.bf16 %v2165, %v2164
      %v2188 = vpack.c.bf16 %v2167, %v2166
      %v2189 = vpack.c.bf16 %v2169, %v2168
      %v2190 = vpack.c.bf16 %v2171, %v2170
      %v2191 = vpack.c.bf16 %v2173, %v2172
      %v2192 = vpack.c.bf16 %v2175, %v2174
      %v2193 = vld [vmem:[%s4] sm:$0x3]
      %2195 = vset.pattern.permute.xlu0 0
      %2196 = vperm.xlu0 %2195, %v2193
      %v2197 = vpop.permute.xlu0 %2196
      %2199 = vmatprep.subr.bf16.mxu0 0
      %2200 = vmatpush1.bf16.xpose.msra.mxu0 %v2177
      %2201 = vmatprep.subr.bf16.mxu0 0
      %2202 = vmatpush1.bf16.xpose.msra.mxu0 %v2178
      %2203 = vmatprep.subr.bf16.mxu0 0
      %2204 = vmatpush1.bf16.xpose.msra.mxu0 %v2179
      %2205 = vmatprep.subr.bf16.mxu0 0
      %2206 = vmatpush1.bf16.xpose.msra.mxu0 %v2180
      %2207 = vmatprep.subr.bf16.mxu0 0
      %2208 = vmatpush1.bf16.xpose.msra.mxu0 %v2181
      %2209 = vmatprep.subr.bf16.mxu0 0
      %2210 = vmatpush1.bf16.xpose.msra.mxu0 %v2182
      %2211 = vmatprep.subr.bf16.mxu0 0
      %2212 = vmatpush1.bf16.xpose.msra.mxu0 %v2183
      %2213 = vmatprep.subr.bf16.mxu0 0
      %2214 = vmatpush1.bf16.xpose.msra.mxu0 %v2184
      %2215 = vmatprep.subr.bf16.mxu0 0
      %2216 = vmatpush1.bf16.xpose.msra.mxu0 %v2185
      %2217 = vmatprep.subr.bf16.mxu0 0
      %2218 = vmatpush1.bf16.xpose.msra.mxu0 %v2186
      %2219 = vmatprep.subr.bf16.mxu0 0
      %2220 = vmatpush1.bf16.xpose.msra.mxu0 %v2187
      %2221 = vmatprep.subr.bf16.mxu0 0
      %2222 = vmatpush1.bf16.xpose.msra.mxu0 %v2188
      %2223 = vmatprep.subr.bf16.mxu0 0
      %2224 = vmatpush1.bf16.xpose.msra.mxu0 %v2189
      %2225 = vmatprep.subr.bf16.mxu0 0
      %2226 = vmatpush1.bf16.xpose.msra.mxu0 %v2190
      %2227 = vmatprep.subr.bf16.mxu0 0
      %2228 = vmatpush1.bf16.xpose.msra.mxu0 %v2191
      %2229 = vmatprep.subr.bf16.mxu0 0
      %2230 = vmatpush1.bf16.xpose.msra.mxu0 %v2192
      %2231 = vmatprep.mubr.bf16.mxu0 0
      %2232 = vmatmul.mubr.bf16.gmra.mrb[0].mxu0 %v2176
      %v2233 = vpop.f32.mrb[0].mxu0
      %v2234 = vadd.f32 %v2197, %v2233
      %v2235 = vpop.f32.mrb[0].mxu0
      %v2236 = vadd.f32 %v2197, %v2235
      %v2237 = vpop.f32.mrb[0].mxu0
      %v2238 = vpop.f32.mrb[0].mxu0
      %2239 = vdwg.mxu0
      %v2242 = vcombine.low %v2234, %v2236
      %v2244 = vunpack.c.l.s4 1983009808
      %v2245 = vunpack.c.0.s8 %v2244
      %v2246 = vlaneseq
      %v2247 = vshrl.u32 %v2246, 7
      %v2248 = vsub.s32 %v2245, %v2247
      %v2249 = vrot.slane %v2242, %v2248
      %2251 = vst [vmem:[%s226] sm:$0xf] %v2249
      %s2252 = smul.u32 2, %s16
      %p2253 = scmp.lt.s32.totalorder %s2252, 3
      %s2254 = scalar_select %p2253, %s2252, 3
      %s2255 = smul.addr %s2254, 2
      %s2256 = scalar_lea.vmem %s5, %s2255
      // Predicated region
      $region41: #{albert_linear_highway_forward.1} parent=39 // pred_check
        %p2257 = pneg %p144
      $region42: #{albert_linear_highway_forward.1} parent=39 // pred_check_branch
        %2259 = sbr.rel (%p2257) target = $region44
      $region43: #{albert_linear_highway_forward.1} parent=39 // pred_region
        %s2260 = smul.u32 2, %s16
      $region44: #{albert_linear_highway_forward.1} parent=39 // pred_fallthru
        _
    $region40: #{albert_linear_highway_forward.1} parent=5 // pred_fallthru
      _
    %p2261 = scmp.le.s32.totalorder 2, %s11
    // Predicated region
    $region45: #{albert_linear_highway_forward.1} parent=5 // pred_check
      %p2262 = pneg %p2261
    $region46: #{albert_linear_highway_forward.1} parent=5 // pred_check_branch
      %2264 = sbr.rel (%p2262) target = $region48
    $region47: #{albert_linear_highway_forward.1} parent=5 // pred_region
      %s2265 = ssub.s32 %s11, 2
      // Predicated region
      $region49: #{albert_linear_highway_forward.1} parent=47 // pred_check
        %p2266 = pneg %p150
      $region50: #{albert_linear_highway_forward.1} parent=47 // pred_check_branch
        %2268 = sbr.rel (%p2266) target = $region52
      $region51: #{albert_linear_highway_forward.1} parent=47 // pred_region
        %s2269 = smul.u32 2, %s17
        %p2270 = scmp.lt.s32.totalorder %s2269, 3
        %s2271 = scalar_select %p2270, %s2269, 3
        %s2272 = smul.addr %s2271, 2
        %s2273 = scalar_lea.vmem %s5, %s2272
      $region52: #{albert_linear_highway_forward.1} parent=47 // pred_fallthru
        _
    $region48: #{albert_linear_highway_forward.1} parent=5 // pred_fallthru
      _
  $region6: #{albert_linear_highway_forward.1} parent=0 // loop_footer
    %s15 = sadd.s32 1, %s11
  $region7: #{albert_linear_highway_forward.1} parent=0 // loop_footer_branch
    %10 = sbr.rel target = $region3
  $region8: #{albert_linear_highway_forward.1} parent=0 // loop_exit
    _

</llo_original>
